<compile_context>
chip_gen: v6e
topology: v6e:2x2x1
jax: 0.10.0
libtpu: 0.0.40
codegen_flags: <defaults>
</compile_context>

<pallas_src>
import math
import functools

import jax
import jax.numpy as jnp
from jax import lax
from jax.experimental import pallas as pl
from jax.experimental.pallas import tpu as pltpu


# ---------------------------------------------------------------------------
# Pallas kernel: full encoder stack. Grid = (batch_blocks, layer); the layer
# axis is sequential ("arbitrary") and the (TB, S, D) activation lives in the
# output block (constant block index over layers -> resident in VMEM).
# ---------------------------------------------------------------------------
def encoder_stack_kernel(x_ref, pad_ref, wq_ref, wk_ref, wv_ref, wfc_ref,
                         w1_ref, w2_ref, out_ref, *maybe_attn_ref,
                         n_heads, d_k, d_v):
    attn_ref = maybe_attn_ref[0] if maybe_attn_ref else None

    l = pl.program_id(1)

    # Layer 0: load the bf16 embedded input into the layer-resident output
    # block (f32). Stays in VMEM for all layers of this batch block.
    @pl.when(l == 0)
    def _():
        out_ref[...] = x_ref[...].astype(jnp.float32)

    x3 = out_ref[...]                            # (TB, S, D) f32, resident
    tb, seq, d_model = x3.shape
    x2 = x3.reshape(tb * seq, d_model)           # flatten batch tile for matmuls
    x_bf = x2.astype(jnp.bfloat16)

    inv_sqrt_dk = jnp.float32(1.0 / math.sqrt(d_k))
    inv_d = jnp.float32(1.0 / d_model)

    # ---- fused full-width QKV projections (K = d_model, M = TB*S) ----------
    q = jnp.dot(x_bf, wq_ref[0], preferred_element_type=jnp.float32)  # (M,H*dk)
    k = jnp.dot(x_bf, wk_ref[0], preferred_element_type=jnp.float32)  # (M,H*dk)
    v = jnp.dot(x_bf, wv_ref[0], preferred_element_type=jnp.float32)  # (M,H*dv)

    # Single bf16 casts; 1/sqrt(d_k) folded into Q here (not per head).
    q_bf = (q * inv_sqrt_dk).astype(jnp.bfloat16)
    k_bf = k.astype(jnp.bfloat16)
    v_bf = v.astype(jnp.bfloat16)

    pad = pad_ref[...]                           # (TB, 1, S) f32, 1.0 where PAD
    fc = wfc_ref[0]                              # (H*d_v, D) bf16

    # ---- per-sequence, per-head attention (trace-time unrolled) ------------
    # Output projection accumulated per head into full-width (S, D) f32 ->
    # no sub-128-lane stores anywhere on the context path.
    rows = []
    for t in range(tb):
        neg = jnp.where(pad[t] > 0.5, jnp.float32(-1.0e9),
                        jnp.float32(0.0))        # (1, S) additive mask
        q_t = q_bf[t * seq:(t + 1) * seq, :]
        k_t = k_bf[t * seq:(t + 1) * seq, :]
        v_t = v_bf[t * seq:(t + 1) * seq, :]

        acc_t = jnp.zeros((seq, d_model), jnp.float32)
        for h in range(n_heads):
            qh = q_t[:, h * d_k:(h + 1) * d_k]
            kh = k_t[:, h * d_k:(h + 1) * d_k]
            vh = v_t[:, h * d_v:(h + 1) * d_v]

            s = jnp.dot(qh, kh.T, preferred_element_type=jnp.float32) + neg

            # softmax over keys (f32; exact reciprocal on the (S,1) denom so
            # stored probabilities sum to 1)
            m = jnp.max(s, axis=-1, keepdims=True)
            e = jnp.exp(s - m)
            denom = jnp.sum(e, axis=-1, keepdims=True)
            p = e * (1.0 / denom)                # (S, S)

            if attn_ref is not None:
                attn_ref[t, 0, h] = p.astype(jnp.bfloat16)

            ctx = jnp.dot(p.astype(jnp.bfloat16), vh,
                          preferred_element_type=jnp.float32)        # (S, d_v)
            acc_t = acc_t + jnp.dot(ctx.astype(jnp.bfloat16),
                                    fc[h * d_v:(h + 1) * d_v, :],
                                    preferred_element_type=jnp.float32)
        rows.append(acc_t)

    attn_out = jnp.concatenate(rows, axis=0) if tb > 1 else rows[0]  # (M, D)

    # ---- residual + LayerNorm (affine-free, eps=1e-5), two-pass stats ------
    y = attn_out + x2
    mu = jnp.sum(y, axis=-1, keepdims=True) * inv_d
    yc = y - mu
    var = jnp.sum(yc * yc, axis=-1, keepdims=True) * inv_d
    y = yc * lax.rsqrt(var + 1e-5)

    # ---- position-wise feed-forward -----------------------------------------
    h1 = jnp.dot(y.astype(jnp.bfloat16), w1_ref[0],
                 preferred_element_type=jnp.float32)
    h1 = jnp.maximum(h1, 0.0)
    ff = jnp.dot(h1.astype(jnp.bfloat16), w2_ref[0],
                 preferred_element_type=jnp.float32)

    z = ff + y
    mu2 = jnp.sum(z, axis=-1, keepdims=True) * inv_d
    zc = z - mu2
    var2 = jnp.sum(zc * zc, axis=-1, keepdims=True) * inv_d
    new_x = zc * lax.rsqrt(var2 + 1e-5)

    # Write back into the resident output block (HBM writeback only happens
    # when the batch-block index changes, i.e. after the last layer).
    out_ref[...] = new_x.reshape(tb, seq, d_model)


def encoder_stack_pallas(x_bf16, pad_f, wq, wk, wv, wfc, w1, w2,
                         *, n_heads, d_k, d_v, block_batch=None,
                         return_attn=True):
    """x_bf16: (B,S,D) bf16; pad_f: (B,1,S) f32; weights stacked over layers."""
    B, S, D = x_bf16.shape
    L = wq.shape[0]
    d_ff = w1.shape[-1]

    if block_batch is None:
        # Aim for >= 256 matmul rows per grid step (fills the 256-wide MXU on
        # v6e/v7x) while keeping B % TB == 0.
        target = max(1, min(B, -(-256 // S)))
        tb = 1
        for cand in range(target, 0, -1):
            if B % cand == 0:
                tb = cand
                break
    else:
        tb = block_batch
    assert B % tb == 0, "block_batch must divide batch"

    kernel = functools.partial(encoder_stack_kernel,
                               n_heads=n_heads, d_k=d_k, d_v=d_v)

    out_shapes = [jax.ShapeDtypeStruct((B, S, D), jnp.float32)]
    out_specs = [pl.BlockSpec((tb, S, D), lambda b, l: (b, 0, 0))]
    if return_attn:
        # bf16 halves the dominant HBM writeback / VMEM double-buffering.
        out_shapes.append(
            jax.ShapeDtypeStruct((B, L, n_heads, S, S), jnp.bfloat16))
        out_specs.append(pl.BlockSpec((tb, 1, n_heads, S, S),
                                      lambda b, l: (b, l, 0, 0, 0)))

    res = pl.pallas_call(
        kernel,
        out_shape=tuple(out_shapes),
        grid=(B // tb, L),
        in_specs=[
            pl.BlockSpec((tb, S, D), lambda b, l: (b, 0, 0)),             # x bf16
            pl.BlockSpec((tb, 1, S), lambda b, l: (b, 0, 0)),             # pad
            pl.BlockSpec((1, D, n_heads * d_k), lambda b, l: (l, 0, 0)),  # W_Q
            pl.BlockSpec((1, D, n_heads * d_k), lambda b, l: (l, 0, 0)),  # W_K
            pl.BlockSpec((1, D, n_heads * d_v), lambda b, l: (l, 0, 0)),  # W_V
            pl.BlockSpec((1, n_heads * d_v, D), lambda b, l: (l, 0, 0)),  # fc
            pl.BlockSpec((1, D, d_ff), lambda b, l: (l, 0, 0)),           # ffn W1
            pl.BlockSpec((1, d_ff, D), lambda b, l: (l, 0, 0)),           # ffn W2
        ],
        out_specs=tuple(out_specs),
        compiler_params=pltpu.CompilerParams(
            dimension_semantics=("parallel", "arbitrary"),
            vmem_limit_bytes=48 * 1024 * 1024),
    )(x_bf16, pad_f, wq, wk, wv, wfc, w1, w2)

    out = res[0]
    attn = res[1] if return_attn else None
    return out, attn


# ---------------------------------------------------------------------------
# Plain-JAX glue: embedding, positional encoding, pad mask, parameter init.
# ---------------------------------------------------------------------------
def positional_encoding(seq_len, d_model):
    position = jnp.arange(seq_len, dtype=jnp.float32)[:, None]
    div_term = jnp.exp(jnp.arange(0, d_model, 2, dtype=jnp.float32)
                       * (-math.log(10000.0) / d_model))
    pe = jnp.zeros((seq_len, d_model), jnp.float32)
    pe = pe.at[:, 0::2].set(jnp.sin(position * div_term))
    pe = pe.at[:, 1::2].set(jnp.cos(position * div_term))
    return pe


def init_params(key, src_vocab_size, n_layers, d_model, d_k, d_v, d_ff, n_heads):
    def linear(k, fan_in, fan_out):
        # PyTorch nn.Linear default: U(-1/sqrt(fan_in), 1/sqrt(fan_in)).
        # Stored bf16: halves weight HBM traffic; matmuls accumulate in f32.
        bound = 1.0 / math.sqrt(fan_in)
        w = jax.random.uniform(k, (fan_in, fan_out), jnp.float32, -bound, bound)
        return w.astype(jnp.bfloat16)

    keys = jax.random.split(key, 1 + 6 * n_layers)

    def stack(offset, fan_in, fan_out):
        return jnp.stack([linear(keys[1 + 6 * i + offset], fan_in, fan_out)
                          for i in range(n_layers)])

    return {
        # nn.Embedding default: N(0, 1)
        "emb": jax.random.normal(keys[0], (src_vocab_size, d_model), jnp.float32),
        "wq":  stack(0, d_model, n_heads * d_k),
        "wk":  stack(1, d_model, n_heads * d_k),
        "wv":  stack(2, d_model, n_heads * d_v),
        "wfc": stack(3, n_heads * d_v, d_model),
        "w1":  stack(4, d_model, d_ff),
        "w2":  stack(5, d_ff, d_model),
    }


def encoder_forward(enc_inputs, params, *, n_heads, d_k, d_v, return_attn=True):
    """enc_inputs: int32 [batch, src_len] token ids (0 == PAD)."""
    B, S = enc_inputs.shape
    d_model = params["emb"].shape[1]

    x = jnp.take(params["emb"], enc_inputs, axis=0)           # [B, S, D] f32
    x = x + positional_encoding(S, d_model)[None, :, :]
    # dropout(p=0.1) treated as identity (inference mode)
    x_bf = x.astype(jnp.bfloat16)     # halve input DMA; resident state is f32

    # get_attn_pad_mask, stored O(S) per sequence: 1.0 where the KEY token is 0
    pad_f = (enc_inputs == 0).astype(jnp.float32)[:, None, :]  # (B, 1, S)

    out, attn_all = encoder_stack_pallas(
        x_bf, pad_f, params["wq"], params["wk"], params["wv"], params["wfc"],
        params["w1"], params["w2"], n_heads=n_heads, d_k=d_k, d_v=d_v,
        return_attn=return_attn)

    if return_attn:
        attns = [attn_all[:, i] for i in range(attn_all.shape[1])]
    else:
        attns = []
    return out, attns


# ---------------------------------------------------------------------------
if __name__ == "__main__":
    # Small, forward-consistent shapes.
    src_vocab_size = 16
    n_layers = 2
    d_model = 32
    d_k = d_v = 16
    d_ff = 64
    n_heads = 2
    B, S = 2, 8

    key = jax.random.PRNGKey(0)
    k_tok, k_par = jax.random.split(key)

    params = init_params(k_par, src_vocab_size, n_layers,
                         d_model, d_k, d_v, d_ff, n_heads)

    # Deterministic token ids in [1, vocab), with trailing PAD (0) tokens to
    # exercise the attention pad mask.
    tokens = jax.random.randint(k_tok, (B, S), 1, src_vocab_size,
                                dtype=jnp.int32)
    tokens = tokens.at[0, 6:].set(0)
    tokens = tokens.at[1, 5:].set(0)

    enc_out, enc_attns = encoder_forward(tokens, params,
                                         n_heads=n_heads, d_k=d_k, d_v=d_v)
    jax.block_until_ready(enc_out)
    for a in enc_attns:
        jax.block_until_ready(a)

    assert enc_out.shape == (B, S, d_model)
    assert all(a.shape == (B, n_heads, S, S) for a in enc_attns)
    assert bool(jnp.all(jnp.isfinite(enc_out)))
    # softmax rows must sum to ~1 (bf16 storage tolerance)
    for a in enc_attns:
        sums = jnp.sum(a.astype(jnp.float32), axis=-1)
        assert bool(jnp.all(jnp.abs(sums - 1.0) < 1e-2))

    # The attn-free fast path must also run and agree on the encoder output.
    enc_out2, _ = encoder_forward(tokens, params, n_heads=n_heads,
                                  d_k=d_k, d_v=d_v, return_attn=False)
    jax.block_until_ready(enc_out2)
    assert bool(jnp.all(jnp.abs(enc_out - enc_out2) < 1e-5))

    print("KERNEL_OK")
</pallas_src>

<mosaic_0001>
module attributes {stable_mosaic.version = 11 : i64} {
  func.func @encoder_stack_kernel(%arg0: i32, %arg1: i32, %arg2: memref<2x8x32xbf16, #tpu.memory_space<vmem>>, %arg3: memref<2x1x8xf32, #tpu.memory_space<vmem>>, %arg4: memref<1x32x32xbf16, #tpu.memory_space<vmem>>, %arg5: memref<1x32x32xbf16, #tpu.memory_space<vmem>>, %arg6: memref<1x32x32xbf16, #tpu.memory_space<vmem>>, %arg7: memref<1x32x32xbf16, #tpu.memory_space<vmem>>, %arg8: memref<1x32x64xbf16, #tpu.memory_space<vmem>>, %arg9: memref<1x64x32xbf16, #tpu.memory_space<vmem>>, %arg10: memref<2x8x32xf32, #tpu.memory_space<vmem>>, %arg11: memref<2x1x2x8x8xbf16, #tpu.memory_space<vmem>>) attributes {dimension_semantics = [#tpu.dimension_semantics<parallel>, #tpu.dimension_semantics<arbitrary>], iteration_bounds = array<i64: 1, 2>, scalar_prefetch = 0 : i64, scratch_operands = 0 : i64, tpu.core_type = #tpu.core_type<tc>, window_params = [{transform_indices = @transform_0, window_bounds = array<i64: 2, 8, 32>}, {transform_indices = @transform_1, window_bounds = array<i64: 2, 1, 8>}, {transform_indices = @transform_2, window_bounds = array<i64: 1, 32, 32>}, {transform_indices = @transform_3, window_bounds = array<i64: 1, 32, 32>}, {transform_indices = @transform_4, window_bounds = array<i64: 1, 32, 32>}, {transform_indices = @transform_5, window_bounds = array<i64: 1, 32, 32>}, {transform_indices = @transform_6, window_bounds = array<i64: 1, 32, 64>}, {transform_indices = @transform_7, window_bounds = array<i64: 1, 64, 32>}, {transform_indices = @transform_8, window_bounds = array<i64: 2, 8, 32>}, {transform_indices = @transform_9, window_bounds = array<i64: 2, 1, 2, 8, 8>}]} {
    %c0_i32 = arith.constant 0 : i32
    %0 = arith.cmpi eq, %arg1, %c0_i32 : i32
    %1 = arith.extui %0 : i1 to i32
    %c0_i32_0 = arith.constant 0 : i32
    %2 = arith.cmpi ne, %1, %c0_i32_0 : i32
    scf.if %2 {
      %c0_94 = arith.constant 0 : index
      %c0_95 = arith.constant 0 : index
      %c0_96 = arith.constant 0 : index
      %204 = vector.load %arg2[%c0_94, %c0_95, %c0_96] : memref<2x8x32xbf16, #tpu.memory_space<vmem>>, vector<2x8x32xbf16>
      %205 = arith.extf %204 : vector<2x8x32xbf16> to vector<2x8x32xf32>
      %c0_97 = arith.constant 0 : index
      %c0_98 = arith.constant 0 : index
      %c0_99 = arith.constant 0 : index
      %206 = vector.load %arg10[%c0_97, %c0_98, %c0_99] : memref<2x8x32xf32, #tpu.memory_space<vmem>>, vector<2x8x32xf32>
      tpu.vector_store %arg10[%c0_97, %c0_98, %c0_99], %205 {strides = array<i32>} : memref<2x8x32xf32, #tpu.memory_space<vmem>>, vector<2x8x32xf32>,
    } else {
    }
    %c0 = arith.constant 0 : index
    %c0_1 = arith.constant 0 : index
    %c0_2 = arith.constant 0 : index
    %3 = vector.load %arg10[%c0, %c0_1, %c0_2] : memref<2x8x32xf32, #tpu.memory_space<vmem>>, vector<2x8x32xf32>
    %4 = vector.shape_cast %3 : vector<2x8x32xf32> to vector<16x32xf32>
    %5 = arith.truncf %4 : vector<16x32xf32> to vector<16x32xbf16>
    %c0_3 = arith.constant 0 : index
    %c0_4 = arith.constant 0 : index
    %c0_5 = arith.constant 0 : index
    %6 = vector.load %arg4[%c0_3, %c0_4, %c0_5] : memref<1x32x32xbf16, #tpu.memory_space<vmem>>, vector<1x32x32xbf16>
    %7 = vector.shape_cast %6 : vector<1x32x32xbf16> to vector<32x32xbf16>
    %cst = arith.constant dense<0.000000e+00> : vector<16x32xf32>
    %8 = tpu.matmul %5, %7, %cst {dimension_numbers = #tpu.dot_dimension_numbers<[1], [0], [0], [1], [0, 0, 1, 1], [], []>} : vector<16x32xbf16>, vector<32x32xbf16>, vector<16x32xf32> -> vector<16x32xf32>
    %c0_6 = arith.constant 0 : index
    %c0_7 = arith.constant 0 : index
    %c0_8 = arith.constant 0 : index
    %9 = vector.load %arg5[%c0_6, %c0_7, %c0_8] : memref<1x32x32xbf16, #tpu.memory_space<vmem>>, vector<1x32x32xbf16>
    %10 = vector.shape_cast %9 : vector<1x32x32xbf16> to vector<32x32xbf16>
    %cst_9 = arith.constant dense<0.000000e+00> : vector<16x32xf32>
    %11 = tpu.matmul %5, %10, %cst_9 {dimension_numbers = #tpu.dot_dimension_numbers<[1], [0], [0], [1], [0, 0, 1, 1], [], []>} : vector<16x32xbf16>, vector<32x32xbf16>, vector<16x32xf32> -> vector<16x32xf32>
    %c0_10 = arith.constant 0 : index
    %c0_11 = arith.constant 0 : index
    %c0_12 = arith.constant 0 : index
    %12 = vector.load %arg6[%c0_10, %c0_11, %c0_12] : memref<1x32x32xbf16, #tpu.memory_space<vmem>>, vector<1x32x32xbf16>
    %13 = vector.shape_cast %12 : vector<1x32x32xbf16> to vector<32x32xbf16>
    %cst_13 = arith.constant dense<0.000000e+00> : vector<16x32xf32>
    %14 = tpu.matmul %5, %13, %cst_13 {dimension_numbers = #tpu.dot_dimension_numbers<[1], [0], [0], [1], [0, 0, 1, 1], [], []>} : vector<16x32xbf16>, vector<32x32xbf16>, vector<16x32xf32> -> vector<16x32xf32>
    %cst_14 = arith.constant 2.500000e-01 : f32
    %15 = vector.broadcast %cst_14 : f32 to vector<16x32xf32>
    %16 = arith.mulf %8, %15 : vector<16x32xf32>
    %17 = arith.truncf %16 : vector<16x32xf32> to vector<16x32xbf16>
    %18 = arith.truncf %11 : vector<16x32xf32> to vector<16x32xbf16>
    %19 = arith.truncf %14 : vector<16x32xf32> to vector<16x32xbf16>
    %c0_15 = arith.constant 0 : index
    %c0_16 = arith.constant 0 : index
    %c0_17 = arith.constant 0 : index
    %20 = vector.load %arg3[%c0_15, %c0_16, %c0_17] : memref<2x1x8xf32, #tpu.memory_space<vmem>>, vector<2x1x8xf32>
    %c0_18 = arith.constant 0 : index
    %c0_19 = arith.constant 0 : index
    %c0_20 = arith.constant 0 : index
    %21 = vector.load %arg7[%c0_18, %c0_19, %c0_20] : memref<1x32x32xbf16, #tpu.memory_space<vmem>>, vector<1x32x32xbf16>
    %22 = vector.shape_cast %21 : vector<1x32x32xbf16> to vector<32x32xbf16>
    %23 = vector.extract_strided_slice %20 {offsets = [0, 0, 0], sizes = [1, 1, 8], strides = [1, 1, 1]} : vector<2x1x8xf32> to vector<1x1x8xf32>
    %24 = vector.shape_cast %23 : vector<1x1x8xf32> to vector<1x8xf32>
    %cst_21 = arith.constant 5.000000e-01 : f32
    %25 = vector.broadcast %cst_21 : f32 to vector<1x8xf32>
    %26 = arith.cmpf ogt, %24, %25 : vector<1x8xf32>
    %cst_22 = arith.constant -1.000000e+09 : f32
    %cst_23 = arith.constant 0.000000e+00 : f32
    %27 = vector.broadcast %cst_22 : f32 to vector<1x8xf32>
    %28 = vector.broadcast %cst_23 : f32 to vector<1x8xf32>
    %29 = arith.select %26, %27, %28 : vector<1x8xi1>, vector<1x8xf32>
    %30 = vector.extract_strided_slice %17 {offsets = [0, 0], sizes = [8, 32], strides = [1, 1]} : vector<16x32xbf16> to vector<8x32xbf16>
    %31 = vector.extract_strided_slice %18 {offsets = [0, 0], sizes = [8, 32], strides = [1, 1]} : vector<16x32xbf16> to vector<8x32xbf16>
    %32 = vector.extract_strided_slice %19 {offsets = [0, 0], sizes = [8, 32], strides = [1, 1]} : vector<16x32xbf16> to vector<8x32xbf16>
    %cst_24 = arith.constant 0.000000e+00 : f32
    %33 = vector.broadcast %cst_24 : f32 to vector<8x32xf32>
    %34 = vector.extract_strided_slice %30 {offsets = [0, 0], sizes = [8, 16], strides = [1, 1]} : vector<8x32xbf16> to vector<8x16xbf16>
    %35 = vector.extract_strided_slice %31 {offsets = [0, 0], sizes = [8, 16], strides = [1, 1]} : vector<8x32xbf16> to vector<8x16xbf16>
    %36 = vector.extract_strided_slice %32 {offsets = [0, 0], sizes = [8, 16], strides = [1, 1]} : vector<8x32xbf16> to vector<8x16xbf16>
    %37 = tpu.transpose %35, [1, 0] : vector<8x16xbf16> -> vector<16x8xbf16>
    %cst_25 = arith.constant dense<0.000000e+00> : vector<8x8xf32>
    %38 = tpu.matmul %34, %37, %cst_25 {dimension_numbers = #tpu.dot_dimension_numbers<[1], [0], [0], [1], [0, 0, 1, 1], [], []>} : vector<8x16xbf16>, vector<16x8xbf16>, vector<8x8xf32> -> vector<8x8xf32>
    %39 = vector.broadcast %29 : vector<1x8xf32> to vector<8x8xf32>
    %40 = arith.addf %38, %39 : vector<8x8xf32>
    %cst_26 = arith.constant dense<0xFF800000> : vector<8xf32>
    %41 = vector.multi_reduction <maximumf>, %40, %cst_26 [1] : vector<8x8xf32> to vector<8xf32>
    %42 = vector.shape_cast %41 : vector<8xf32> to vector<8x1xf32>
    %43 = vector.broadcast %42 : vector<8x1xf32> to vector<8x8xf32>
    %44 = arith.subf %40, %43 : vector<8x8xf32>
    %45 = math.exp %44 : vector<8x8xf32>
    %cst_27 = arith.constant dense<0.000000e+00> : vector<8xf32>
    %46 = vector.multi_reduction <add>, %45, %cst_27 [1] : vector<8x8xf32> to vector<8xf32>
    %47 = vector.shape_cast %46 : vector<8xf32> to vector<8x1xf32>
    %cst_28 = arith.constant 1.000000e+00 : f32
    %48 = vector.broadcast %cst_28 : f32 to vector<8x1xf32>
    %49 = arith.divf %48, %47 : vector<8x1xf32>
    %50 = vector.broadcast %49 : vector<8x1xf32> to vector<8x8xf32>
    %51 = arith.mulf %45, %50 : vector<8x8xf32>
    %52 = arith.truncf %51 : vector<8x8xf32> to vector<8x8xbf16>
    %c0_29 = arith.constant 0 : index
    %c0_30 = arith.constant 0 : index
    %c0_31 = arith.constant 0 : index
    %c0_32 = arith.constant 0 : index
    %c0_33 = arith.constant 0 : index
    %53 = vector.load %arg11[%c0_29, %c0_30, %c0_31, %c0_32, %c0_33] : memref<2x1x2x8x8xbf16, #tpu.memory_space<vmem>>, vector<1x1x1x8x8xbf16>
    %54 = vector.shape_cast %53 : vector<1x1x1x8x8xbf16> to vector<8x8xbf16>
    %55 = vector.shape_cast %52 : vector<8x8xbf16> to vector<1x1x1x8x8xbf16>
    tpu.vector_store %arg11[%c0_29, %c0_30, %c0_31, %c0_32, %c0_33], %55 {strides = array<i32>} : memref<2x1x2x8x8xbf16, #tpu.memory_space<vmem>>, vector<1x1x1x8x8xbf16>,
    %56 = arith.truncf %51 : vector<8x8xf32> to vector<8x8xbf16>
    %cst_34 = arith.constant dense<0.000000e+00> : vector<8x16xf32>
    %57 = tpu.matmul %56, %36, %cst_34 {dimension_numbers = #tpu.dot_dimension_numbers<[1], [0], [0], [1], [0, 0, 1, 1], [], []>} : vector<8x8xbf16>, vector<8x16xbf16>, vector<8x16xf32> -> vector<8x16xf32>
    %58 = arith.truncf %57 : vector<8x16xf32> to vector<8x16xbf16>
    %59 = vector.extract_strided_slice %22 {offsets = [0, 0], sizes = [16, 32], strides = [1, 1]} : vector<32x32xbf16> to vector<16x32xbf16>
    %cst_35 = arith.constant dense<0.000000e+00> : vector<8x32xf32>
    %60 = tpu.matmul %58, %59, %cst_35 {dimension_numbers = #tpu.dot_dimension_numbers<[1], [0], [0], [1], [0, 0, 1, 1], [], []>} : vector<8x16xbf16>, vector<16x32xbf16>, vector<8x32xf32> -> vector<8x32xf32>
    %61 = arith.addf %33, %60 : vector<8x32xf32>
    %62 = vector.extract_strided_slice %30 {offsets = [0, 16], sizes = [8, 16], strides = [1, 1]} : vector<8x32xbf16> to vector<8x16xbf16>
    %63 = vector.extract_strided_slice %31 {offsets = [0, 16], sizes = [8, 16], strides = [1, 1]} : vector<8x32xbf16> to vector<8x16xbf16>
    %64 = vector.extract_strided_slice %32 {offsets = [0, 16], sizes = [8, 16], strides = [1, 1]} : vector<8x32xbf16> to vector<8x16xbf16>
    %65 = tpu.transpose %63, [1, 0] : vector<8x16xbf16> -> vector<16x8xbf16>
    %cst_36 = arith.constant dense<0.000000e+00> : vector<8x8xf32>
    %66 = tpu.matmul %62, %65, %cst_36 {dimension_numbers = #tpu.dot_dimension_numbers<[1], [0], [0], [1], [0, 0, 1, 1], [], []>} : vector<8x16xbf16>, vector<16x8xbf16>, vector<8x8xf32> -> vector<8x8xf32>
    %67 = vector.broadcast %29 : vector<1x8xf32> to vector<8x8xf32>
    %68 = arith.addf %66, %67 : vector<8x8xf32>
    %cst_37 = arith.constant dense<0xFF800000> : vector<8xf32>
    %69 = vector.multi_reduction <maximumf>, %68, %cst_37 [1] : vector<8x8xf32> to vector<8xf32>
    %70 = vector.shape_cast %69 : vector<8xf32> to vector<8x1xf32>
    %71 = vector.broadcast %70 : vector<8x1xf32> to vector<8x8xf32>
    %72 = arith.subf %68, %71 : vector<8x8xf32>
    %73 = math.exp %72 : vector<8x8xf32>
    %cst_38 = arith.constant dense<0.000000e+00> : vector<8xf32>
    %74 = vector.multi_reduction <add>, %73, %cst_38 [1] : vector<8x8xf32> to vector<8xf32>
    %75 = vector.shape_cast %74 : vector<8xf32> to vector<8x1xf32>
    %cst_39 = arith.constant 1.000000e+00 : f32
    %76 = vector.broadcast %cst_39 : f32 to vector<8x1xf32>
    %77 = arith.divf %76, %75 : vector<8x1xf32>
    %78 = vector.broadcast %77 : vector<8x1xf32> to vector<8x8xf32>
    %79 = arith.mulf %73, %78 : vector<8x8xf32>
    %80 = arith.truncf %79 : vector<8x8xf32> to vector<8x8xbf16>
    %c0_40 = arith.constant 0 : index
    %c0_41 = arith.constant 0 : index
    %c1 = arith.constant 1 : index
    %c0_42 = arith.constant 0 : index
    %c0_43 = arith.constant 0 : index
    %81 = vector.load %arg11[%c0_40, %c0_41, %c1, %c0_42, %c0_43] : memref<2x1x2x8x8xbf16, #tpu.memory_space<vmem>>, vector<1x1x1x8x8xbf16>
    %82 = vector.shape_cast %81 : vector<1x1x1x8x8xbf16> to vector<8x8xbf16>
    %83 = vector.shape_cast %80 : vector<8x8xbf16> to vector<1x1x1x8x8xbf16>
    tpu.vector_store %arg11[%c0_40, %c0_41, %c1, %c0_42, %c0_43], %83 {strides = array<i32>} : memref<2x1x2x8x8xbf16, #tpu.memory_space<vmem>>, vector<1x1x1x8x8xbf16>,
    %84 = arith.truncf %79 : vector<8x8xf32> to vector<8x8xbf16>
    %cst_44 = arith.constant dense<0.000000e+00> : vector<8x16xf32>
    %85 = tpu.matmul %84, %64, %cst_44 {dimension_numbers = #tpu.dot_dimension_numbers<[1], [0], [0], [1], [0, 0, 1, 1], [], []>} : vector<8x8xbf16>, vector<8x16xbf16>, vector<8x16xf32> -> vector<8x16xf32>
    %86 = arith.truncf %85 : vector<8x16xf32> to vector<8x16xbf16>
    %87 = vector.extract_strided_slice %22 {offsets = [16, 0], sizes = [16, 32], strides = [1, 1]} : vector<32x32xbf16> to vector<16x32xbf16>
    %cst_45 = arith.constant dense<0.000000e+00> : vector<8x32xf32>
    %88 = tpu.matmul %86, %87, %cst_45 {dimension_numbers = #tpu.dot_dimension_numbers<[1], [0], [0], [1], [0, 0, 1, 1], [], []>} : vector<8x16xbf16>, vector<16x32xbf16>, vector<8x32xf32> -> vector<8x32xf32>
    %89 = arith.addf %61, %88 : vector<8x32xf32>
    %90 = vector.extract_strided_slice %20 {offsets = [1, 0, 0], sizes = [1, 1, 8], strides = [1, 1, 1]} : vector<2x1x8xf32> to vector<1x1x8xf32>
    %91 = vector.shape_cast %90 : vector<1x1x8xf32> to vector<1x8xf32>
    %cst_46 = arith.constant 5.000000e-01 : f32
    %92 = vector.broadcast %cst_46 : f32 to vector<1x8xf32>
    %93 = arith.cmpf ogt, %91, %92 : vector<1x8xf32>
    %cst_47 = arith.constant -1.000000e+09 : f32
    %cst_48 = arith.constant 0.000000e+00 : f32
    %94 = vector.broadcast %cst_47 : f32 to vector<1x8xf32>
    %95 = vector.broadcast %cst_48 : f32 to vector<1x8xf32>
    %96 = arith.select %93, %94, %95 : vector<1x8xi1>, vector<1x8xf32>
    %97 = vector.extract_strided_slice %17 {offsets = [8, 0], sizes = [8, 32], strides = [1, 1]} : vector<16x32xbf16> to vector<8x32xbf16>
    %98 = vector.extract_strided_slice %18 {offsets = [8, 0], sizes = [8, 32], strides = [1, 1]} : vector<16x32xbf16> to vector<8x32xbf16>
    %99 = vector.extract_strided_slice %19 {offsets = [8, 0], sizes = [8, 32], strides = [1, 1]} : vector<16x32xbf16> to vector<8x32xbf16>
    %cst_49 = arith.constant 0.000000e+00 : f32
    %100 = vector.broadcast %cst_49 : f32 to vector<8x32xf32>
    %101 = vector.extract_strided_slice %97 {offsets = [0, 0], sizes = [8, 16], strides = [1, 1]} : vector<8x32xbf16> to vector<8x16xbf16>
    %102 = vector.extract_strided_slice %98 {offsets = [0, 0], sizes = [8, 16], strides = [1, 1]} : vector<8x32xbf16> to vector<8x16xbf16>
    %103 = vector.extract_strided_slice %99 {offsets = [0, 0], sizes = [8, 16], strides = [1, 1]} : vector<8x32xbf16> to vector<8x16xbf16>
    %104 = tpu.transpose %102, [1, 0] : vector<8x16xbf16> -> vector<16x8xbf16>
    %cst_50 = arith.constant dense<0.000000e+00> : vector<8x8xf32>
    %105 = tpu.matmul %101, %104, %cst_50 {dimension_numbers = #tpu.dot_dimension_numbers<[1], [0], [0], [1], [0, 0, 1, 1], [], []>} : vector<8x16xbf16>, vector<16x8xbf16>, vector<8x8xf32> -> vector<8x8xf32>
    %106 = vector.broadcast %96 : vector<1x8xf32> to vector<8x8xf32>
    %107 = arith.addf %105, %106 : vector<8x8xf32>
    %cst_51 = arith.constant dense<0xFF800000> : vector<8xf32>
    %108 = vector.multi_reduction <maximumf>, %107, %cst_51 [1] : vector<8x8xf32> to vector<8xf32>
    %109 = vector.shape_cast %108 : vector<8xf32> to vector<8x1xf32>
    %110 = vector.broadcast %109 : vector<8x1xf32> to vector<8x8xf32>
    %111 = arith.subf %107, %110 : vector<8x8xf32>
    %112 = math.exp %111 : vector<8x8xf32>
    %cst_52 = arith.constant dense<0.000000e+00> : vector<8xf32>
    %113 = vector.multi_reduction <add>, %112, %cst_52 [1] : vector<8x8xf32> to vector<8xf32>
    %114 = vector.shape_cast %113 : vector<8xf32> to vector<8x1xf32>
    %cst_53 = arith.constant 1.000000e+00 : f32
    %115 = vector.broadcast %cst_53 : f32 to vector<8x1xf32>
    %116 = arith.divf %115, %114 : vector<8x1xf32>
    %117 = vector.broadcast %116 : vector<8x1xf32> to vector<8x8xf32>
    %118 = arith.mulf %112, %117 : vector<8x8xf32>
    %119 = arith.truncf %118 : vector<8x8xf32> to vector<8x8xbf16>
    %c1_54 = arith.constant 1 : index
    %c0_55 = arith.constant 0 : index
    %c0_56 = arith.constant 0 : index
    %c0_57 = arith.constant 0 : index
    %c0_58 = arith.constant 0 : index
    %120 = vector.load %arg11[%c1_54, %c0_55, %c0_56, %c0_57, %c0_58] : memref<2x1x2x8x8xbf16, #tpu.memory_space<vmem>>, vector<1x1x1x8x8xbf16>
    %121 = vector.shape_cast %120 : vector<1x1x1x8x8xbf16> to vector<8x8xbf16>
    %122 = vector.shape_cast %119 : vector<8x8xbf16> to vector<1x1x1x8x8xbf16>
    tpu.vector_store %arg11[%c1_54, %c0_55, %c0_56, %c0_57, %c0_58], %122 {strides = array<i32>} : memref<2x1x2x8x8xbf16, #tpu.memory_space<vmem>>, vector<1x1x1x8x8xbf16>,
    %123 = arith.truncf %118 : vector<8x8xf32> to vector<8x8xbf16>
    %cst_59 = arith.constant dense<0.000000e+00> : vector<8x16xf32>
    %124 = tpu.matmul %123, %103, %cst_59 {dimension_numbers = #tpu.dot_dimension_numbers<[1], [0], [0], [1], [0, 0, 1, 1], [], []>} : vector<8x8xbf16>, vector<8x16xbf16>, vector<8x16xf32> -> vector<8x16xf32>
    %125 = arith.truncf %124 : vector<8x16xf32> to vector<8x16xbf16>
    %126 = vector.extract_strided_slice %22 {offsets = [0, 0], sizes = [16, 32], strides = [1, 1]} : vector<32x32xbf16> to vector<16x32xbf16>
    %cst_60 = arith.constant dense<0.000000e+00> : vector<8x32xf32>
    %127 = tpu.matmul %125, %126, %cst_60 {dimension_numbers = #tpu.dot_dimension_numbers<[1], [0], [0], [1], [0, 0, 1, 1], [], []>} : vector<8x16xbf16>, vector<16x32xbf16>, vector<8x32xf32> -> vector<8x32xf32>
    %128 = arith.addf %100, %127 : vector<8x32xf32>
    %129 = vector.extract_strided_slice %97 {offsets = [0, 16], sizes = [8, 16], strides = [1, 1]} : vector<8x32xbf16> to vector<8x16xbf16>
    %130 = vector.extract_strided_slice %98 {offsets = [0, 16], sizes = [8, 16], strides = [1, 1]} : vector<8x32xbf16> to vector<8x16xbf16>
    %131 = vector.extract_strided_slice %99 {offsets = [0, 16], sizes = [8, 16], strides = [1, 1]} : vector<8x32xbf16> to vector<8x16xbf16>
    %132 = tpu.transpose %130, [1, 0] : vector<8x16xbf16> -> vector<16x8xbf16>
    %cst_61 = arith.constant dense<0.000000e+00> : vector<8x8xf32>
    %133 = tpu.matmul %129, %132, %cst_61 {dimension_numbers = #tpu.dot_dimension_numbers<[1], [0], [0], [1], [0, 0, 1, 1], [], []>} : vector<8x16xbf16>, vector<16x8xbf16>, vector<8x8xf32> -> vector<8x8xf32>
    %134 = vector.broadcast %96 : vector<1x8xf32> to vector<8x8xf32>
    %135 = arith.addf %133, %134 : vector<8x8xf32>
    %cst_62 = arith.constant dense<0xFF800000> : vector<8xf32>
    %136 = vector.multi_reduction <maximumf>, %135, %cst_62 [1] : vector<8x8xf32> to vector<8xf32>
    %137 = vector.shape_cast %136 : vector<8xf32> to vector<8x1xf32>
    %138 = vector.broadcast %137 : vector<8x1xf32> to vector<8x8xf32>
    %139 = arith.subf %135, %138 : vector<8x8xf32>
    %140 = math.exp %139 : vector<8x8xf32>
    %cst_63 = arith.constant dense<0.000000e+00> : vector<8xf32>
    %141 = vector.multi_reduction <add>, %140, %cst_63 [1] : vector<8x8xf32> to vector<8xf32>
    %142 = vector.shape_cast %141 : vector<8xf32> to vector<8x1xf32>
    %cst_64 = arith.constant 1.000000e+00 : f32
    %143 = vector.broadcast %cst_64 : f32 to vector<8x1xf32>
    %144 = arith.divf %143, %142 : vector<8x1xf32>
    %145 = vector.broadcast %144 : vector<8x1xf32> to vector<8x8xf32>
    %146 = arith.mulf %140, %145 : vector<8x8xf32>
    %147 = arith.truncf %146 : vector<8x8xf32> to vector<8x8xbf16>
    %c1_65 = arith.constant 1 : index
    %c0_66 = arith.constant 0 : index
    %c1_67 = arith.constant 1 : index
    %c0_68 = arith.constant 0 : index
    %c0_69 = arith.constant 0 : index
    %148 = vector.load %arg11[%c1_65, %c0_66, %c1_67, %c0_68, %c0_69] : memref<2x1x2x8x8xbf16, #tpu.memory_space<vmem>>, vector<1x1x1x8x8xbf16>
    %149 = vector.shape_cast %148 : vector<1x1x1x8x8xbf16> to vector<8x8xbf16>
    %150 = vector.shape_cast %147 : vector<8x8xbf16> to vector<1x1x1x8x8xbf16>
    tpu.vector_store %arg11[%c1_65, %c0_66, %c1_67, %c0_68, %c0_69], %150 {strides = array<i32>} : memref<2x1x2x8x8xbf16, #tpu.memory_space<vmem>>, vector<1x1x1x8x8xbf16>,
    %151 = arith.truncf %146 : vector<8x8xf32> to vector<8x8xbf16>
    %cst_70 = arith.constant dense<0.000000e+00> : vector<8x16xf32>
    %152 = tpu.matmul %151, %131, %cst_70 {dimension_numbers = #tpu.dot_dimension_numbers<[1], [0], [0], [1], [0, 0, 1, 1], [], []>} : vector<8x8xbf16>, vector<8x16xbf16>, vector<8x16xf32> -> vector<8x16xf32>
    %153 = arith.truncf %152 : vector<8x16xf32> to vector<8x16xbf16>
    %154 = vector.extract_strided_slice %22 {offsets = [16, 0], sizes = [16, 32], strides = [1, 1]} : vector<32x32xbf16> to vector<16x32xbf16>
    %cst_71 = arith.constant dense<0.000000e+00> : vector<8x32xf32>
    %155 = tpu.matmul %153, %154, %cst_71 {dimension_numbers = #tpu.dot_dimension_numbers<[1], [0], [0], [1], [0, 0, 1, 1], [], []>} : vector<8x16xbf16>, vector<16x32xbf16>, vector<8x32xf32> -> vector<8x32xf32>
    %156 = arith.addf %128, %155 : vector<8x32xf32>
    %157 = tpu.concatenate %89, %156 in 0 : vector<8x32xf32>, vector<8x32xf32> -> vector<16x32xf32>
    %158 = arith.addf %157, %4 : vector<16x32xf32>
    %cst_72 = arith.constant dense<0.000000e+00> : vector<16xf32>
    %159 = vector.multi_reduction <add>, %158, %cst_72 [1] : vector<16x32xf32> to vector<16xf32>
    %160 = vector.shape_cast %159 : vector<16xf32> to vector<16x1xf32>
    %cst_73 = arith.constant 3.125000e-02 : f32
    %161 = vector.broadcast %cst_73 : f32 to vector<16x1xf32>
    %162 = arith.mulf %160, %161 : vector<16x1xf32>
    %163 = vector.broadcast %162 : vector<16x1xf32> to vector<16x32xf32>
    %164 = arith.subf %158, %163 : vector<16x32xf32>
    %165 = arith.mulf %164, %164 : vector<16x32xf32>
    %cst_74 = arith.constant dense<0.000000e+00> : vector<16xf32>
    %166 = vector.multi_reduction <add>, %165, %cst_74 [1] : vector<16x32xf32> to vector<16xf32>
    %167 = vector.shape_cast %166 : vector<16xf32> to vector<16x1xf32>
    %cst_75 = arith.constant 3.125000e-02 : f32
    %168 = vector.broadcast %cst_75 : f32 to vector<16x1xf32>
    %169 = arith.mulf %167, %168 : vector<16x1xf32>
    %cst_76 = arith.constant 9.99999974E-6 : f32
    %170 = vector.broadcast %cst_76 : f32 to vector<16x1xf32>
    %171 = arith.addf %169, %170 : vector<16x1xf32>
    %172 = math.rsqrt %171 : vector<16x1xf32>
    %173 = vector.broadcast %172 : vector<16x1xf32> to vector<16x32xf32>
    %174 = arith.mulf %164, %173 : vector<16x32xf32>
    %175 = arith.truncf %174 : vector<16x32xf32> to vector<16x32xbf16>
    %c0_77 = arith.constant 0 : index
    %c0_78 = arith.constant 0 : index
    %c0_79 = arith.constant 0 : index
    %176 = vector.load %arg8[%c0_77, %c0_78, %c0_79] : memref<1x32x64xbf16, #tpu.memory_space<vmem>>, vector<1x32x64xbf16>
    %177 = vector.shape_cast %176 : vector<1x32x64xbf16> to vector<32x64xbf16>
    %cst_80 = arith.constant dense<0.000000e+00> : vector<16x64xf32>
    %178 = tpu.matmul %175, %177, %cst_80 {dimension_numbers = #tpu.dot_dimension_numbers<[1], [0], [0], [1], [0, 0, 1, 1], [], []>} : vector<16x32xbf16>, vector<32x64xbf16>, vector<16x64xf32> -> vector<16x64xf32>
    %cst_81 = arith.constant 0.000000e+00 : f32
    %179 = vector.broadcast %cst_81 : f32 to vector<16x64xf32>
    %180 = arith.maximumf %178, %179 : vector<16x64xf32>
    %181 = arith.truncf %180 : vector<16x64xf32> to vector<16x64xbf16>
    %c0_82 = arith.constant 0 : index
    %c0_83 = arith.constant 0 : index
    %c0_84 = arith.constant 0 : index
    %182 = vector.load %arg9[%c0_82, %c0_83, %c0_84] : memref<1x64x32xbf16, #tpu.memory_space<vmem>>, vector<1x64x32xbf16>
    %183 = vector.shape_cast %182 : vector<1x64x32xbf16> to vector<64x32xbf16>
    %cst_85 = arith.constant dense<0.000000e+00> : vector<16x32xf32>
    %184 = tpu.matmul %181, %183, %cst_85 {dimension_numbers = #tpu.dot_dimension_numbers<[1], [0], [0], [1], [0, 0, 1, 1], [], []>} : vector<16x64xbf16>, vector<64x32xbf16>, vector<16x32xf32> -> vector<16x32xf32>
    %185 = arith.addf %184, %174 : vector<16x32xf32>
    %cst_86 = arith.constant dense<0.000000e+00> : vector<16xf32>
    %186 = vector.multi_reduction <add>, %185, %cst_86 [1] : vector<16x32xf32> to vector<16xf32>
    %187 = vector.shape_cast %186 : vector<16xf32> to vector<16x1xf32>
    %cst_87 = arith.constant 3.125000e-02 : f32
    %188 = vector.broadcast %cst_87 : f32 to vector<16x1xf32>
    %189 = arith.mulf %187, %188 : vector<16x1xf32>
    %190 = vector.broadcast %189 : vector<16x1xf32> to vector<16x32xf32>
    %191 = arith.subf %185, %190 : vector<16x32xf32>
    %192 = arith.mulf %191, %191 : vector<16x32xf32>
    %cst_88 = arith.constant dense<0.000000e+00> : vector<16xf32>
    %193 = vector.multi_reduction <add>, %192, %cst_88 [1] : vector<16x32xf32> to vector<16xf32>
    %194 = vector.shape_cast %193 : vector<16xf32> to vector<16x1xf32>
    %cst_89 = arith.constant 3.125000e-02 : f32
    %195 = vector.broadcast %cst_89 : f32 to vector<16x1xf32>
    %196 = arith.mulf %194, %195 : vector<16x1xf32>
    %cst_90 = arith.constant 9.99999974E-6 : f32
    %197 = vector.broadcast %cst_90 : f32 to vector<16x1xf32>
    %198 = arith.addf %196, %197 : vector<16x1xf32>
    %199 = math.rsqrt %198 : vector<16x1xf32>
    %200 = vector.broadcast %199 : vector<16x1xf32> to vector<16x32xf32>
    %201 = arith.mulf %191, %200 : vector<16x32xf32>
    %202 = vector.shape_cast %201 : vector<16x32xf32> to vector<2x8x32xf32>
    %c0_91 = arith.constant 0 : index
    %c0_92 = arith.constant 0 : index
    %c0_93 = arith.constant 0 : index
    %203 = vector.load %arg10[%c0_91, %c0_92, %c0_93] : memref<2x8x32xf32, #tpu.memory_space<vmem>>, vector<2x8x32xf32>
    tpu.vector_store %arg10[%c0_91, %c0_92, %c0_93], %202 {strides = array<i32>} : memref<2x8x32xf32, #tpu.memory_space<vmem>>, vector<2x8x32xf32>,
    return
  }
  func.func @transform_0(%arg0: i32, %arg1: i32) -> (i32, i32, i32) {
    %c0_i32 = arith.constant 0 : i32
    %c0_i32_0 = arith.constant 0 : i32
    %c0_i32_1 = arith.constant 0 : i32
    return %arg0, %c0_i32, %c0_i32_0 : i32, i32, i32
  }
  func.func @transform_1(%arg0: i32, %arg1: i32) -> (i32, i32, i32) {
    %c0_i32 = arith.constant 0 : i32
    %c0_i32_0 = arith.constant 0 : i32
    %c0_i32_1 = arith.constant 0 : i32
    return %arg0, %c0_i32, %c0_i32_0 : i32, i32, i32
  }
  func.func @transform_2(%arg0: i32, %arg1: i32) -> (i32, i32, i32) {
    %c0_i32 = arith.constant 0 : i32
    %c0_i32_0 = arith.constant 0 : i32
    %c0_i32_1 = arith.constant 0 : i32
    return %arg1, %c0_i32, %c0_i32_0 : i32, i32, i32
  }
  func.func @transform_3(%arg0: i32, %arg1: i32) -> (i32, i32, i32) {
    %c0_i32 = arith.constant 0 : i32
    %c0_i32_0 = arith.constant 0 : i32
    %c0_i32_1 = arith.constant 0 : i32
    return %arg1, %c0_i32, %c0_i32_0 : i32, i32, i32
  }
  func.func @transform_4(%arg0: i32, %arg1: i32) -> (i32, i32, i32) {
    %c0_i32 = arith.constant 0 : i32
    %c0_i32_0 = arith.constant 0 : i32
    %c0_i32_1 = arith.constant 0 : i32
    return %arg1, %c0_i32, %c0_i32_0 : i32, i32, i32
  }
  func.func @transform_5(%arg0: i32, %arg1: i32) -> (i32, i32, i32) {
    %c0_i32 = arith.constant 0 : i32
    %c0_i32_0 = arith.constant 0 : i32
    %c0_i32_1 = arith.constant 0 : i32
    return %arg1, %c0_i32, %c0_i32_0 : i32, i32, i32
  }
  func.func @transform_6(%arg0: i32, %arg1: i32) -> (i32, i32, i32) {
    %c0_i32 = arith.constant 0 : i32
    %c0_i32_0 = arith.constant 0 : i32
    %c0_i32_1 = arith.constant 0 : i32
    return %arg1, %c0_i32, %c0_i32_0 : i32, i32, i32
  }
  func.func @transform_7(%arg0: i32, %arg1: i32) -> (i32, i32, i32) {
    %c0_i32 = arith.constant 0 : i32
    %c0_i32_0 = arith.constant 0 : i32
    %c0_i32_1 = arith.constant 0 : i32
    return %arg1, %c0_i32, %c0_i32_0 : i32, i32, i32
  }
  func.func @transform_8(%arg0: i32, %arg1: i32) -> (i32, i32, i32) {
    %c0_i32 = arith.constant 0 : i32
    %c0_i32_0 = arith.constant 0 : i32
    %c0_i32_1 = arith.constant 0 : i32
    return %arg0, %c0_i32, %c0_i32_0 : i32, i32, i32
  }
  func.func @transform_9(%arg0: i32, %arg1: i32) -> (i32, i32, i32, i32, i32) {
    %c0_i32 = arith.constant 0 : i32
    %c0_i32_0 = arith.constant 0 : i32
    %c0_i32_1 = arith.constant 0 : i32
    %c0_i32_2 = arith.constant 0 : i32
    return %arg0, %arg1, %c0_i32, %c0_i32_0, %c0_i32_1 : i32, i32, i32, i32, i32
  }
}

</mosaic_0001>

<llo_original>
// kernel: tpu_custom_call.1
$region0: #{tpu_custom_call.1}
  #allocation0 [shape = 'u32[]', space=smem, size = 0x4, offset = 0x4, fixed_abs, tag = 'smem constant byte address 0x4 - core index']
  #allocation1 [shape = 'u32[144,128]{1,0:T(1,128)}', space=vmem, size = 0x12000, scoped, tag = 'internal scratch']
  #allocation12 [shape = 's32[]', space=sflag, size = 0x4, offset = 0, fixed_abs, tag = 'sflag constant byte address 0x0 - dummy sync flag']
  %s0 = inlined_call_operand.hbm [shape: bf16[2,8,32], index: 0, kind: input, shape index: {}]
  %s1 = inlined_call_operand.hbm [shape: f32[2,1,8], index: 1, kind: input, shape index: {}]
  %s2 = inlined_call_operand.vmem [shape: bf16[2,32,32], index: 2, kind: input, shape index: {}]
  %s3 = inlined_call_operand.vmem [shape: bf16[2,32,32], index: 3, kind: input, shape index: {}]
  %s4 = inlined_call_operand.vmem [shape: bf16[2,32,32], index: 4, kind: input, shape index: {}]
  %s5 = inlined_call_operand.hbm [shape: bf16[2,32,32], index: 5, kind: input, shape index: {}]
  %s6 = inlined_call_operand.hbm [shape: bf16[2,32,64], index: 6, kind: input, shape index: {}]
  %s7 = inlined_call_operand.vmem [shape: bf16[2,64,32], index: 7, kind: input, shape index: {}]
  %s8 = inlined_call_operand.hbm [shape: f32[2,8,32], index: 8, kind: output, shape index: {0}]
  %s9 = inlined_call_operand.hbm [shape: bf16[2,2,2,8,8], index: 9, kind: output, shape index: {1}]
  %10 = xla_tuple %s8, %s9
  %s11 = sld [smem:[#allocation0]]
  $region93: #{tpu_custom_call.1} parent=0
    _
  %s13 = ssub.s32 1, %s11
  %s14 = scalar_select 0, %s13, %s11
  $region1: #{tpu_custom_call.1} parent=0
    #allocation2 [shape = 'u8[4096]{0}', space=vmem, size = 0x1000, scoped, tag = 'input window, operand 0, single buffered']
    #allocation3 [shape = 's32[2]{0}', space=sflag, size = 0x8, scoped, tag = 'scoped memory for tpu_custom_call.1']
    #allocation4 [shape = 's32[2]{0}', space=sflag, size = 0x8, scoped, tag = 'scoped memory for tpu_custom_call.1']
    #allocation5 [shape = 'u8[1024]{0}', space=vmem, size = 0x400, scoped, tag = 'input window, operand 1, single buffered']
    #allocation6 [shape = 's32[1]{0}', space=sflag, size = 0x4, scoped, tag = 'scoped memory for tpu_custom_call.1']
    #allocation7 [shape = 'u8[16384]{0}', space=vmem, size = 0x4000, scoped, tag = 'input window, operand 5']
    #allocation8 [shape = 'u8[16384]{0}', space=vmem, size = 0x4000, scoped, tag = 'input window, operand 6']
    #allocation9 [shape = 'u8[8192]{0}', space=vmem, size = 0x2000, scoped, tag = 'output window, operand 0, single buffered']
    #allocation10 [shape = 'u8[16384]{0}', space=vmem, size = 0x4000, scoped, tag = 'output window, operand 1']
    #allocation11 [shape = 's32[2]{0}', space=sflag, size = 0x8, scoped, tag = 'scoped memory for tpu_custom_call.1']
    %15 = vsyncpa [#allocation3], 0
    %16 = vsyncpa [#allocation6], 0
    %17 = vsyncpa [#allocation4], 0
    %18 = vsyncpa [#allocation11], 0
    %s19 = scalar_lea.sflag [#allocation11], 1
    %20 = vsyncpa %s19, 0
    loop: start=0, step=1, limit=4
    $region2: #{tpu_custom_call.1} parent=1 // loop_pre_header
      _
    $region3: #{tpu_custom_call.1} parent=1 // loop_header
      %s22 = sphi 0, %s26
      %p23 = scmp.ge.s32.totalorder %s22, 4
      %s29 = sphi 0, %s41
      %s30 = sphi 0, %s37
      %s31 = sphi 0, %s29
      %s32 = sphi 0, %s30
      %s33 = sphi 0, %s31
      %s34 = sphi 0, %s32
      %s44 = sphi 0, %s46
      %s47 = sphi 0, %s44
      %s48 = sphi 0, %s47
      %s64 = sphi 0, %s48
      %s70 = sphi 0, %s72
      %s73 = sphi 0, %s70
      %s74 = sphi 0, %s73
      %s90 = sphi 0, %s74
      %s96 = sphi 0, %s98
      %s99 = sphi 0, %s96
      %s100 = sphi 0, %s99
      %s116 = sphi 0, %s100
      %s122 = sphi 0, %s124
      %s125 = sphi 0, %s122
      %s126 = sphi 0, %s125
      %s142 = sphi 0, %s126
      %s148 = sphi 0, %s150
      %s151 = sphi 0, %s148
      %s152 = sphi 0, %s151
      %s168 = sphi 0, %s152
      %s174 = sphi 0, %s176
      %s177 = sphi 0, %s174
      %s178 = sphi 0, %s177
      %s194 = sphi 0, %s178
      %s200 = sphi 0, %s202
      %s203 = sphi 0, %s200
      %s204 = sphi 0, %s203
      %s220 = sphi 0, %s204
      %s226 = sphi 0, %s228
      %s229 = sphi 0, %s226
      %s230 = sphi 0, %s229
      %s246 = sphi 0, %s230
      %s252 = sphi 0, %s254
      %s255 = sphi 0, %s252
      %s256 = sphi 0, %s255
      %s272 = sphi 0, %s256
      %s280 = sphi 0, %s282
      %s283 = sphi 0, %s280
      %s284 = sphi 0, %s283
      %s300 = sphi 0, %s284
    $region4: #{tpu_custom_call.1} parent=1 // loop_header_branch
      %25 = sbr.rel (%p23) target = $region8
    $region5: #{tpu_custom_call.1} parent=1 // loop_body
      %s27 = ssub.s32 %s22, 1
      %s28 = ssub.s32 %s22, 2
      %s35 = sadd.s32 1, %s30
      %p36 = scmp.ge.s32.totalorder %s35, 2
      %s37 = scalar_select %p36, 0, %s35
      %s38 = sadd.s32 1, %s29
      %s39 = scalar_select %p36, %s38, %s29
      %p40 = scmp.ge.s32.totalorder %s39, 1
      %s41 = scalar_select %p40, 0, %s39
      %s42 = ssub.s32 %s29, %s41
      %p43 = scmp.eq.s32.totalorder %s42, 0
      %s45 = sadd.s32 %s44, 1
      %s46 = scalar_select %p43, %s44, %s45
      %p49 = pneg %p43
      %p50 = scmp.eq.s32.totalorder %s22, 1
      %p51 = por %p49, %p50
      %p52 = scmp.ne.s32.totalorder %s44, %s47
      %p53 = scmp.eq.s32.totalorder %s22, 0
      %p54 = por %p52, %p53
      %p55 = scmp.ne.s32.totalorder %s44, %s47
      %p56 = scmp.eq.s32.totalorder %s27, 1
      %p57 = por %p55, %p56
      %p58 = scmp.ne.s32.totalorder %s47, %s48
      %p59 = scmp.eq.s32.totalorder %s27, 0
      %p60 = por %p58, %p59
      %p61 = scmp.ne.s32.totalorder %s47, %s48
      %p62 = scmp.eq.s32.totalorder %s28, 1
      %p63 = por %p61, %p62
      %p65 = scmp.ne.s32.totalorder %s48, %s64
      %p66 = scmp.eq.s32.totalorder %s28, 0
      %p67 = por %p65, %p66
      %s68 = ssub.s32 %s29, %s41
      %p69 = scmp.eq.s32.totalorder %s68, 0
      %s71 = sadd.s32 %s70, 1
      %s72 = scalar_select %p69, %s70, %s71
      %p75 = pneg %p69
      %p76 = scmp.eq.s32.totalorder %s22, 1
      %p77 = por %p75, %p76
      %p78 = scmp.ne.s32.totalorder %s70, %s73
      %p79 = scmp.eq.s32.totalorder %s22, 0
      %p80 = por %p78, %p79
      %p81 = scmp.ne.s32.totalorder %s70, %s73
      %p82 = scmp.eq.s32.totalorder %s27, 1
      %p83 = por %p81, %p82
      %p84 = scmp.ne.s32.totalorder %s73, %s74
      %p85 = scmp.eq.s32.totalorder %s27, 0
      %p86 = por %p84, %p85
      %p87 = scmp.ne.s32.totalorder %s73, %s74
      %p88 = scmp.eq.s32.totalorder %s28, 1
      %p89 = por %p87, %p88
      %p91 = scmp.ne.s32.totalorder %s74, %s90
      %p92 = scmp.eq.s32.totalorder %s28, 0
      %p93 = por %p91, %p92
      %s94 = ssub.s32 %s30, %s37
      %p95 = scmp.eq.s32.totalorder %s94, 0
      %s97 = sadd.s32 %s96, 1
      %s98 = scalar_select %p95, %s96, %s97
      %p101 = pneg %p95
      %p102 = scmp.eq.s32.totalorder %s22, 1
      %p103 = por %p101, %p102
      %p104 = scmp.ne.s32.totalorder %s96, %s99
      %p105 = scmp.eq.s32.totalorder %s22, 0
      %p106 = por %p104, %p105
      %p107 = scmp.ne.s32.totalorder %s96, %s99
      %p108 = scmp.eq.s32.totalorder %s27, 1
      %p109 = por %p107, %p108
      %p110 = scmp.ne.s32.totalorder %s99, %s100
      %p111 = scmp.eq.s32.totalorder %s27, 0
      %p112 = por %p110, %p111
      %p113 = scmp.ne.s32.totalorder %s99, %s100
      %p114 = scmp.eq.s32.totalorder %s28, 1
      %p115 = por %p113, %p114
      %p117 = scmp.ne.s32.totalorder %s100, %s116
      %p118 = scmp.eq.s32.totalorder %s28, 0
      %p119 = por %p117, %p118
      %s120 = ssub.s32 %s30, %s37
      %p121 = scmp.eq.s32.totalorder %s120, 0
      %s123 = sadd.s32 %s122, 1
      %s124 = scalar_select %p121, %s122, %s123
      %p127 = pneg %p121
      %p128 = scmp.eq.s32.totalorder %s22, 1
      %p129 = por %p127, %p128
      %p130 = scmp.ne.s32.totalorder %s122, %s125
      %p131 = scmp.eq.s32.totalorder %s22, 0
      %p132 = por %p130, %p131
      %p133 = scmp.ne.s32.totalorder %s122, %s125
      %p134 = scmp.eq.s32.totalorder %s27, 1
      %p135 = por %p133, %p134
      %p136 = scmp.ne.s32.totalorder %s125, %s126
      %p137 = scmp.eq.s32.totalorder %s27, 0
      %p138 = por %p136, %p137
      %p139 = scmp.ne.s32.totalorder %s125, %s126
      %p140 = scmp.eq.s32.totalorder %s28, 1
      %p141 = por %p139, %p140
      %p143 = scmp.ne.s32.totalorder %s126, %s142
      %p144 = scmp.eq.s32.totalorder %s28, 0
      %p145 = por %p143, %p144
      %s146 = ssub.s32 %s30, %s37
      %p147 = scmp.eq.s32.totalorder %s146, 0
      %s149 = sadd.s32 %s148, 1
      %s150 = scalar_select %p147, %s148, %s149
      %p153 = pneg %p147
      %p154 = scmp.eq.s32.totalorder %s22, 1
      %p155 = por %p153, %p154
      %p156 = scmp.ne.s32.totalorder %s148, %s151
      %p157 = scmp.eq.s32.totalorder %s22, 0
      %p158 = por %p156, %p157
      %p159 = scmp.ne.s32.totalorder %s148, %s151
      %p160 = scmp.eq.s32.totalorder %s27, 1
      %p161 = por %p159, %p160
      %p162 = scmp.ne.s32.totalorder %s151, %s152
      %p163 = scmp.eq.s32.totalorder %s27, 0
      %p164 = por %p162, %p163
      %p165 = scmp.ne.s32.totalorder %s151, %s152
      %p166 = scmp.eq.s32.totalorder %s28, 1
      %p167 = por %p165, %p166
      %p169 = scmp.ne.s32.totalorder %s152, %s168
      %p170 = scmp.eq.s32.totalorder %s28, 0
      %p171 = por %p169, %p170
      %s172 = ssub.s32 %s30, %s37
      %p173 = scmp.eq.s32.totalorder %s172, 0
      %s175 = sadd.s32 %s174, 1
      %s176 = scalar_select %p173, %s174, %s175
      %p179 = pneg %p173
      %p180 = scmp.eq.s32.totalorder %s22, 1
      %p181 = por %p179, %p180
      %p182 = scmp.ne.s32.totalorder %s174, %s177
      %p183 = scmp.eq.s32.totalorder %s22, 0
      %p184 = por %p182, %p183
      %p185 = scmp.ne.s32.totalorder %s174, %s177
      %p186 = scmp.eq.s32.totalorder %s27, 1
      %p187 = por %p185, %p186
      %p188 = scmp.ne.s32.totalorder %s177, %s178
      %p189 = scmp.eq.s32.totalorder %s27, 0
      %p190 = por %p188, %p189
      %p191 = scmp.ne.s32.totalorder %s177, %s178
      %p192 = scmp.eq.s32.totalorder %s28, 1
      %p193 = por %p191, %p192
      %p195 = scmp.ne.s32.totalorder %s178, %s194
      %p196 = scmp.eq.s32.totalorder %s28, 0
      %p197 = por %p195, %p196
      %s198 = ssub.s32 %s30, %s37
      %p199 = scmp.eq.s32.totalorder %s198, 0
      %s201 = sadd.s32 %s200, 1
      %s202 = scalar_select %p199, %s200, %s201
      %p205 = pneg %p199
      %p206 = scmp.eq.s32.totalorder %s22, 1
      %p207 = por %p205, %p206
      %p208 = scmp.ne.s32.totalorder %s200, %s203
      %p209 = scmp.eq.s32.totalorder %s22, 0
      %p210 = por %p208, %p209
      %p211 = scmp.ne.s32.totalorder %s200, %s203
      %p212 = scmp.eq.s32.totalorder %s27, 1
      %p213 = por %p211, %p212
      %p214 = scmp.ne.s32.totalorder %s203, %s204
      %p215 = scmp.eq.s32.totalorder %s27, 0
      %p216 = por %p214, %p215
      %p217 = scmp.ne.s32.totalorder %s203, %s204
      %p218 = scmp.eq.s32.totalorder %s28, 1
      %p219 = por %p217, %p218
      %p221 = scmp.ne.s32.totalorder %s204, %s220
      %p222 = scmp.eq.s32.totalorder %s28, 0
      %p223 = por %p221, %p222
      %s224 = ssub.s32 %s30, %s37
      %p225 = scmp.eq.s32.totalorder %s224, 0
      %s227 = sadd.s32 %s226, 1
      %s228 = scalar_select %p225, %s226, %s227
      %p231 = pneg %p225
      %p232 = scmp.eq.s32.totalorder %s22, 1
      %p233 = por %p231, %p232
      %p234 = scmp.ne.s32.totalorder %s226, %s229
      %p235 = scmp.eq.s32.totalorder %s22, 0
      %p236 = por %p234, %p235
      %p237 = scmp.ne.s32.totalorder %s226, %s229
      %p238 = scmp.eq.s32.totalorder %s27, 1
      %p239 = por %p237, %p238
      %p240 = scmp.ne.s32.totalorder %s229, %s230
      %p241 = scmp.eq.s32.totalorder %s27, 0
      %p242 = por %p240, %p241
      %p243 = scmp.ne.s32.totalorder %s229, %s230
      %p244 = scmp.eq.s32.totalorder %s28, 1
      %p245 = por %p243, %p244
      %p247 = scmp.ne.s32.totalorder %s230, %s246
      %p248 = scmp.eq.s32.totalorder %s28, 0
      %p249 = por %p247, %p248
      %s250 = ssub.s32 %s29, %s41
      %p251 = scmp.eq.s32.totalorder %s250, 0
      %s253 = sadd.s32 %s252, 1
      %s254 = scalar_select %p251, %s252, %s253
      %p257 = pneg %p251
      %p258 = scmp.eq.s32.totalorder %s22, 1
      %p259 = por %p257, %p258
      %p260 = scmp.ne.s32.totalorder %s252, %s255
      %p261 = scmp.eq.s32.totalorder %s22, 0
      %p262 = por %p260, %p261
      %p263 = scmp.ne.s32.totalorder %s252, %s255
      %p264 = scmp.eq.s32.totalorder %s27, 1
      %p265 = por %p263, %p264
      %p266 = scmp.ne.s32.totalorder %s255, %s256
      %p267 = scmp.eq.s32.totalorder %s27, 0
      %p268 = por %p266, %p267
      %p269 = scmp.ne.s32.totalorder %s255, %s256
      %p270 = scmp.eq.s32.totalorder %s28, 1
      %p271 = por %p269, %p270
      %p273 = scmp.ne.s32.totalorder %s256, %s272
      %p274 = scmp.eq.s32.totalorder %s28, 0
      %p275 = por %p273, %p274
      %s276 = ssub.s32 %s29, %s41
      %s277 = ssub.s32 %s30, %s37
      %s278 = sor.u32 %s276, %s277
      %p279 = scmp.eq.s32.totalorder %s278, 0
      %s281 = sadd.s32 %s280, 1
      %s282 = scalar_select %p279, %s280, %s281
      %p285 = pneg %p279
      %p286 = scmp.eq.s32.totalorder %s22, 1
      %p287 = por %p285, %p286
      %p288 = scmp.ne.s32.totalorder %s280, %s283
      %p289 = scmp.eq.s32.totalorder %s22, 0
      %p290 = por %p288, %p289
      %p291 = scmp.ne.s32.totalorder %s280, %s283
      %p292 = scmp.eq.s32.totalorder %s27, 1
      %p293 = por %p291, %p292
      %p294 = scmp.ne.s32.totalorder %s283, %s284
      %p295 = scmp.eq.s32.totalorder %s27, 0
      %p296 = por %p294, %p295
      %p297 = scmp.ne.s32.totalorder %s283, %s284
      %p298 = scmp.eq.s32.totalorder %s28, 1
      %p299 = por %p297, %p298
      %p301 = scmp.ne.s32.totalorder %s284, %s300
      %p302 = scmp.eq.s32.totalorder %s28, 0
      %p303 = por %p301, %p302
      %p304 = scmp.le.s32.totalorder 1, %s22
      %p305 = scmp.lt.s32.totalorder %s22, 3
      %p306 = pnand %p304, %p305
      %p307 = pneg %p306
      // Predicated region
      $region9: #{tpu_custom_call.1} parent=5 // pred_check
        _
      $region10: #{tpu_custom_call.1} parent=5 // pred_check_branch
        %309 = sbr.rel (%p306) target = $region12
      $region11: #{tpu_custom_call.1} parent=5 // pred_region
        %s310 = ssub.s32 %s22, 1
        // Predicated region
        $region13: #{tpu_custom_call.1} parent=11 // pred_check
          %p311 = pneg %p60
        $region14: #{tpu_custom_call.1} parent=11 // pred_check_branch
          %313 = sbr.rel (%p311) target = $region16
        $region15: #{tpu_custom_call.1} parent=11 // pred_region
          %s314 = smul.u32 2, %s31
          %s316 = ssub.s32 128, 128
          %317 = vsyncadd [#allocation3], %s316
          %s318 = smul.addr %s314, 64
          %s319 = scalar_lea.hbm %s0, %s318
          %s320 = sshll.u32 [#allocation2], 4
          %s321 = int_to_ptr.vmem [resolvable:$true] %s320
          %326 = dma.hbm_to_vmem [thread:$0]  %s319, 128, %s321, [#allocation3], 64, 64, 4
        $region16: #{tpu_custom_call.1} parent=11 // pred_fallthru
          _
        // Predicated region
        $region17: #{tpu_custom_call.1} parent=11 // pred_check
          %p327 = pneg %p86
        $region18: #{tpu_custom_call.1} parent=11 // pred_check_branch
          %329 = sbr.rel (%p327) target = $region20
        $region19: #{tpu_custom_call.1} parent=11 // pred_region
          %s330 = smul.u32 2, %s31
          %s332 = ssub.s32 32, 32
          %333 = vsyncadd [#allocation6], %s332
          %s334 = smul.addr %s330, 16
          %s335 = scalar_lea.hbm %s1, %s334
          %s336 = sshll.u32 [#allocation5], 4
          %s337 = int_to_ptr.vmem [resolvable:$true] %s336
          %342 = dma.hbm_to_vmem [thread:$0]  %s335, 32, %s337, [#allocation6], 16, 16, 1
        $region20: #{tpu_custom_call.1} parent=11 // pred_fallthru
          _
      $region12: #{tpu_custom_call.1} parent=5 // pred_fallthru
        _
      %p343 = scmp.lt.s32.totalorder %s22, 2
      // Predicated region
      $region21: #{tpu_custom_call.1} parent=5 // pred_check
        %p344 = pneg %p343
      $region22: #{tpu_custom_call.1} parent=5 // pred_check_branch
        %346 = sbr.rel (%p344) target = $region24
      $region23: #{tpu_custom_call.1} parent=5 // pred_region
        // Predicated region
        $region25: #{tpu_custom_call.1} parent=23 // pred_check
          %p347 = pneg %p106
        $region26: #{tpu_custom_call.1} parent=23 // pred_check_branch
          %349 = sbr.rel (%p347) target = $region28
        $region27: #{tpu_custom_call.1} parent=23 // pred_region
          %p350 = scmp.lt.s32.totalorder %s30, 1
          %s351 = scalar_select %p350, %s30, 1
          %s352 = smul.addr %s351, 4
          %s353 = smul.addr %s352, 4
          %s354 = scalar_lea.vmem %s2, %s353
        $region28: #{tpu_custom_call.1} parent=23 // pred_fallthru
          _
        // Predicated region
        $region29: #{tpu_custom_call.1} parent=23 // pred_check
          %p355 = pneg %p132
        $region30: #{tpu_custom_call.1} parent=23 // pred_check_branch
          %357 = sbr.rel (%p355) target = $region32
        $region31: #{tpu_custom_call.1} parent=23 // pred_region
          %p358 = scmp.lt.s32.totalorder %s30, 1
          %s359 = scalar_select %p358, %s30, 1
          %s360 = smul.addr %s359, 4
          %s361 = smul.addr %s360, 4
          %s362 = scalar_lea.vmem %s3, %s361
        $region32: #{tpu_custom_call.1} parent=23 // pred_fallthru
          _
        // Predicated region
        $region33: #{tpu_custom_call.1} parent=23 // pred_check
          %p363 = pneg %p158
        $region34: #{tpu_custom_call.1} parent=23 // pred_check_branch
          %365 = sbr.rel (%p363) target = $region36
        $region35: #{tpu_custom_call.1} parent=23 // pred_region
          %p366 = scmp.lt.s32.totalorder %s30, 1
          %s367 = scalar_select %p366, %s30, 1
          %s368 = smul.addr %s367, 4
          %s369 = smul.addr %s368, 4
          %s370 = scalar_lea.vmem %s4, %s369
        $region36: #{tpu_custom_call.1} parent=23 // pred_fallthru
          _
        // Predicated region
        $region37: #{tpu_custom_call.1} parent=23 // pred_check
          %p371 = pneg %p184
        $region38: #{tpu_custom_call.1} parent=23 // pred_check_branch
          %373 = sbr.rel (%p371) target = $region40
        $region39: #{tpu_custom_call.1} parent=23 // pred_region
          %s374 = sand.u32 %s22, 1
          %s375 = scalar_lea.sflag [#allocation3], %s374
          %s376 = sand.u32 %s174, 1
          %s377 = smul.addr %s376, 16
          %s378 = scalar_lea.vmem [#allocation7], %s377
          %s380 = ssub.s32 256, 256
          %381 = vsyncadd %s375, %s380
          %s382 = smul.addr %s30, 4
          %s383 = smul.addr %s382, 64
          %s384 = scalar_lea.hbm %s5, %s383
          %s385 = sshll.u32 %s378, 4
          %s386 = int_to_ptr.vmem [resolvable:$true] %s385
          %391 = dma.hbm_to_vmem [thread:$0]  %s384, 256, %s386, %s375, 64, 64, 4
        $region40: #{tpu_custom_call.1} parent=23 // pred_fallthru
          _
        // Predicated region
        $region41: #{tpu_custom_call.1} parent=23 // pred_check
          %p392 = pneg %p210
        $region42: #{tpu_custom_call.1} parent=23 // pred_check_branch
          %394 = sbr.rel (%p392) target = $region44
        $region43: #{tpu_custom_call.1} parent=23 // pred_region
          %s395 = sand.u32 %s22, 1
          %s396 = scalar_lea.sflag [#allocation3], %s395
          %s397 = sand.u32 %s200, 1
          %s398 = smul.addr %s397, 16
          %s399 = scalar_lea.vmem [#allocation8], %s398
          %s401 = ssub.s32 256, 256
          %402 = vsyncadd %s396, %s401
          %s403 = smul.addr %s30, 4
          %s404 = smul.addr %s403, 64
          %s405 = scalar_lea.hbm %s6, %s404
          %s406 = sshll.u32 %s399, 4
          %s407 = int_to_ptr.vmem [resolvable:$true] %s406
          %412 = dma.hbm_to_vmem [thread:$0]  %s405, 256, %s407, %s396, 64, 64, 4
        $region44: #{tpu_custom_call.1} parent=23 // pred_fallthru
          _
        // Predicated region
        $region45: #{tpu_custom_call.1} parent=23 // pred_check
          %p413 = pneg %p236
        $region46: #{tpu_custom_call.1} parent=23 // pred_check_branch
          %415 = sbr.rel (%p413) target = $region48
        $region47: #{tpu_custom_call.1} parent=23 // pred_region
          %p416 = scmp.lt.s32.totalorder %s30, 1
          %s417 = scalar_select %p416, %s30, 1
          %s418 = smul.addr %s417, 8
          %s419 = smul.addr %s418, 4
          %s420 = scalar_lea.vmem %s7, %s419
        $region48: #{tpu_custom_call.1} parent=23 // pred_fallthru
          _
      $region24: #{tpu_custom_call.1} parent=5 // pred_fallthru
        _
      %p421 = scmp.le.s32.totalorder 1, %s22
      %p422 = scmp.lt.s32.totalorder %s22, 3
      %p423 = pnand %p421, %p422
      %p424 = pneg %p423
      // Predicated region
      $region49: #{tpu_custom_call.1} parent=5 // pred_check
        _
      $region50: #{tpu_custom_call.1} parent=5 // pred_check_branch
        %426 = sbr.rel (%p423) target = $region52
      $region51: #{tpu_custom_call.1} parent=5 // pred_region
        %s427 = ssub.s32 %s22, 1
        // Predicated region
        $region53: #{tpu_custom_call.1} parent=51 // pred_check
          %p428 = pneg %p60
        $region54: #{tpu_custom_call.1} parent=51 // pred_check_branch
          %430 = sbr.rel (%p428) target = $region56
        $region55: #{tpu_custom_call.1} parent=51 // pred_region
          %431 = dma.done [#allocation3], 128
        $region56: #{tpu_custom_call.1} parent=51 // pred_fallthru
          _
        // Predicated region
        $region57: #{tpu_custom_call.1} parent=51 // pred_check
          %p432 = pneg %p86
        $region58: #{tpu_custom_call.1} parent=51 // pred_check_branch
          %434 = sbr.rel (%p432) target = $region60
        $region59: #{tpu_custom_call.1} parent=51 // pred_region
          %435 = dma.done [#allocation6], 32
        $region60: #{tpu_custom_call.1} parent=51 // pred_fallthru
          _
        %s436 = sand.u32 %s27, 1
        %s437 = scalar_lea.sflag [#allocation3], %s436
        %s438 = sand.u32 %s177, 1
        %s439 = smul.addr %s438, 16
        %s440 = scalar_lea.vmem [#allocation7], %s439
        // Predicated region
        $region61: #{tpu_custom_call.1} parent=51 // pred_check
          %p441 = pneg %p190
        $region62: #{tpu_custom_call.1} parent=51 // pred_check_branch
          %443 = sbr.rel (%p441) target = $region64
        $region63: #{tpu_custom_call.1} parent=51 // pred_region
          %444 = dma.done %s437, 256
        $region64: #{tpu_custom_call.1} parent=51 // pred_fallthru
          _
        %s445 = sand.u32 %s27, 1
        %s446 = scalar_lea.sflag [#allocation3], %s445
        %s447 = sand.u32 %s203, 1
        %s448 = smul.addr %s447, 16
        %s449 = scalar_lea.vmem [#allocation8], %s448
        // Predicated region
        $region65: #{tpu_custom_call.1} parent=51 // pred_check
          %p450 = pneg %p216
        $region66: #{tpu_custom_call.1} parent=51 // pred_check_branch
          %452 = sbr.rel (%p450) target = $region68
        $region67: #{tpu_custom_call.1} parent=51 // pred_region
          %453 = dma.done %s446, 256
        $region68: #{tpu_custom_call.1} parent=51 // pred_fallthru
          _
        %p454 = pneg %p60
        %p455 = pneg %p57
        %p456 = pneg %p86
        %p457 = pneg %p83
        %p458 = scmp.lt.s32.totalorder %s32, 1
        %s459 = scalar_select %p458, %s32, 1
        %s460 = smul.addr %s459, 4
        %s461 = smul.addr %s460, 4
        %s462 = scalar_lea.vmem %s2, %s461
        %p463 = pneg %p112
        %p464 = pneg %p109
        %p465 = scmp.lt.s32.totalorder %s32, 1
        %s466 = scalar_select %p465, %s32, 1
        %s467 = smul.addr %s466, 4
        %s468 = smul.addr %s467, 4
        %s469 = scalar_lea.vmem %s3, %s468
        %p470 = pneg %p138
        %p471 = pneg %p135
        %p472 = scmp.lt.s32.totalorder %s32, 1
        %s473 = scalar_select %p472, %s32, 1
        %s474 = smul.addr %s473, 4
        %s475 = smul.addr %s474, 4
        %s476 = scalar_lea.vmem %s4, %s475
        %p477 = pneg %p164
        %p478 = pneg %p161
        %s479 = sand.u32 %s27, 1
        %s480 = scalar_lea.sflag [#allocation3], %s479
        %s481 = sand.u32 %s177, 1
        %s482 = smul.addr %s481, 16
        %s483 = scalar_lea.vmem [#allocation7], %s482
        %p484 = pneg %p190
        %p485 = pneg %p187
        %s486 = sand.u32 %s27, 1
        %s487 = scalar_lea.sflag [#allocation3], %s486
        %s488 = sand.u32 %s203, 1
        %s489 = smul.addr %s488, 16
        %s490 = scalar_lea.vmem [#allocation8], %s489
        %p491 = pneg %p216
        %p492 = pneg %p213
        %p493 = scmp.lt.s32.totalorder %s32, 1
        %s494 = scalar_select %p493, %s32, 1
        %s495 = smul.addr %s494, 8
        %s496 = smul.addr %s495, 4
        %s497 = scalar_lea.vmem %s7, %s496
        %p498 = pneg %p242
        %p499 = pneg %p239
        %p500 = pneg %p268
        %p501 = pneg %p265
        %p502 = pneg %p296
        %p503 = pneg %p293
        %s504 = sand.u32 %s283, 1
        %s505 = scalar_lea.sflag [#allocation11], %s504
        %s506 = sand.u32 %s283, 1
        %s507 = smul.addr %s506, 16
        %s508 = scalar_lea.vmem [#allocation10], %s507
        %s509 = smul.u32 2, %s31
        %s510 = smul.u32 2, %s31
        %p511 = scmp.lt.s32.totalorder %s32, 1
        %s512 = scalar_select %p511, %s32, 1
        %s513 = smul.addr %s512, 4
        %s514 = smul.addr %s513, 4
        %s515 = scalar_lea.vmem %s2, %s514
        %p516 = scmp.lt.s32.totalorder %s32, 1
        %s517 = scalar_select %p516, %s32, 1
        %s518 = smul.addr %s517, 4
        %s519 = smul.addr %s518, 4
        %s520 = scalar_lea.vmem %s3, %s519
        %p521 = scmp.lt.s32.totalorder %s32, 1
        %s522 = scalar_select %p521, %s32, 1
        %s523 = smul.addr %s522, 4
        %s524 = smul.addr %s523, 4
        %s525 = scalar_lea.vmem %s4, %s524
        %p526 = scmp.lt.s32.totalorder %s32, 1
        %s527 = scalar_select %p526, %s32, 1
        %s528 = smul.addr %s527, 8
        %s529 = smul.addr %s528, 4
        %s530 = scalar_lea.vmem %s7, %s529
        %s531 = smul.u32 2, %s31
        %s532 = smul.u32 2, %s31
        %p534 = scmp.eq.s32.totalorder %s32, 0
        // Predicated region
        $region69: #{tpu_custom_call.1} parent=51 // pred_check
          %p535 = pneg %p534
        $region70: #{tpu_custom_call.1} parent=51 // pred_check_branch
          %537 = sbr.rel (%p535) target = $region72
        $region71: #{tpu_custom_call.1} parent=51 // pred_region
          %v538 = vld [vmem:[#allocation2] sm:$0xf]
          %v539 = vld [vmem:[#allocation2 + $0x4] sm:$0xf]
          %v540 = vunpack.c.l.bf16 %v538
          %v541 = vunpack.c.l.bf16 %v539
          %vm542 = vcmask 261120
          %543 = vst.msk [vmem:[#allocation9] sm:$0xff] %vm542, %v540
          %544 = vst.msk [vmem:[#allocation9 + $0x8] sm:$0xff] %vm542, %v541
        $region72: #{tpu_custom_call.1} parent=51 // pred_fallthru
          _
        %v545 = vld [vmem:[#allocation9] sm:$0xff]
        %v546 = vld [vmem:[#allocation9 + $0x8] sm:$0xff]
        %v547 = vpack.c.bf16 %v546, %v545
        %v548 = vld [vmem:[%s515] sm:$0xf]
        %v549 = vld [vmem:[%s515 + $0x4] sm:$0xf]
        %v550 = vld [vmem:[%s515 + $0x8] sm:$0xf]
        %v551 = vld [vmem:[%s515 + $0xc] sm:$0xf]
        %v556 = vunpack.c.l.b16 %v548
        %v557 = vunpack.c.l.b16 %v549
        %v558 = vunpack.c.l.b16 %v550
        %v559 = vunpack.c.l.b16 %v551
        %v560 = vpack.c.b16 %v557, %v556
        %v561 = vpack.c.b16 %v559, %v558
        %vm564 = vcmask 261120
        %v566 = vsel %vm564, %v547, 0
        %568 = vmatprep.subr.bf16.mxu0 0
        %569 = vmatpush1.bf16.msra.mxu0 0
        %570 = vmatprep.subr.bf16.mxu0 0
        %571 = vmatpush1.bf16.msra.mxu0 0
        %572 = vmatprep.subr.bf16.mxu0 0
        %573 = vmatpush1.bf16.msra.mxu0 0
        %574 = vmatprep.subr.bf16.mxu0 0
        %575 = vmatpush1.bf16.msra.mxu0 0
        %576 = vmatprep.subr.bf16.mxu0 0
        %577 = vmatpush1.bf16.msra.mxu0 0
        %578 = vmatprep.subr.bf16.mxu0 0
        %579 = vmatpush1.bf16.msra.mxu0 0
        %580 = vmatprep.subr.bf16.mxu0 0
        %581 = vmatpush1.bf16.msra.mxu0 %v561
        %582 = vmatprep.subr.bf16.mxu0 0
        %583 = vmatpush1.bf16.msra.mxu0 %v560
        %584 = vmatprep.subr.bf16.mxu0 0
        %585 = vmatpush2.bf16.msra.mxu0 0
        %586 = vmatprep.subr.bf16.mxu0 0
        %587 = vmatpush2.bf16.msra.mxu0 0
        %588 = vmatprep.subr.bf16.mxu0 0
        %589 = vmatpush2.bf16.msra.mxu0 0
        %590 = vmatprep.subr.bf16.mxu0 0
        %591 = vmatpush2.bf16.msra.mxu0 0
        %592 = vmatprep.subr.bf16.mxu0 0
        %593 = vmatpush2.bf16.msra.mxu0 0
        %594 = vmatprep.subr.bf16.mxu0 0
        %595 = vmatpush2.bf16.msra.mxu0 0
        %596 = vmatprep.subr.bf16.mxu0 0
        %597 = vmatpush2.bf16.msra.mxu0 0
        %598 = vmatprep.subr.bf16.mxu0 0
        %599 = vmatpush2.bf16.msra.mxu0 0
        %600 = vmatprep.mubr.bf16.mxu0 0
        %601 = vmatmul.mubr.bf16.gmra.mxu0 %v566
        %v602 = vpop.f32.mrf.mxu0
        %v603 = vadd.f32 0.0, %v602
        %v604 = vpop.f32.mrf.mxu0
        %v605 = vpop.f32.mrf.mxu0
        %v606 = vadd.f32 0.0, %v605
        %v607 = vpop.f32.mrf.mxu0
        %608 = vdwg.mxu0
        %v609 = vld [vmem:[%s520] sm:$0xf]
        %v610 = vld [vmem:[%s520 + $0x4] sm:$0xf]
        %v611 = vld [vmem:[%s520 + $0x8] sm:$0xf]
        %v612 = vld [vmem:[%s520 + $0xc] sm:$0xf]
        %v617 = vunpack.c.l.b16 %v609
        %v618 = vunpack.c.l.b16 %v610
        %v619 = vunpack.c.l.b16 %v611
        %v620 = vunpack.c.l.b16 %v612
        %v621 = vpack.c.b16 %v618, %v617
        %v622 = vpack.c.b16 %v620, %v619
        %625 = vmatprep.subr.bf16.mxu0 0
        %626 = vmatpush1.bf16.msra.mxu0 0
        %627 = vmatprep.subr.bf16.mxu0 0
        %628 = vmatpush1.bf16.msra.mxu0 0
        %629 = vmatprep.subr.bf16.mxu0 0
        %630 = vmatpush1.bf16.msra.mxu0 0
        %631 = vmatprep.subr.bf16.mxu0 0
        %632 = vmatpush1.bf16.msra.mxu0 0
        %633 = vmatprep.subr.bf16.mxu0 0
        %634 = vmatpush1.bf16.msra.mxu0 0
        %635 = vmatprep.subr.bf16.mxu0 0
        %636 = vmatpush1.bf16.msra.mxu0 0
        %637 = vmatprep.subr.bf16.mxu0 0
        %638 = vmatpush1.bf16.msra.mxu0 %v622
        %639 = vmatprep.subr.bf16.mxu0 0
        %640 = vmatpush1.bf16.msra.mxu0 %v621
        %641 = vmatprep.subr.bf16.mxu0 0
        %642 = vmatpush2.bf16.msra.mxu0 0
        %643 = vmatprep.subr.bf16.mxu0 0
        %644 = vmatpush2.bf16.msra.mxu0 0
        %645 = vmatprep.subr.bf16.mxu0 0
        %646 = vmatpush2.bf16.msra.mxu0 0
        %647 = vmatprep.subr.bf16.mxu0 0
        %648 = vmatpush2.bf16.msra.mxu0 0
        %649 = vmatprep.subr.bf16.mxu0 0
        %650 = vmatpush2.bf16.msra.mxu0 0
        %651 = vmatprep.subr.bf16.mxu0 0
        %652 = vmatpush2.bf16.msra.mxu0 0
        %653 = vmatprep.subr.bf16.mxu0 0
        %654 = vmatpush2.bf16.msra.mxu0 0
        %655 = vmatprep.subr.bf16.mxu0 0
        %656 = vmatpush2.bf16.msra.mxu0 0
        %657 = vmatprep.mubr.bf16.mxu0 0
        %658 = vmatmul.mubr.bf16.gmra.mxu0 %v566
        %v659 = vpop.f32.mrf.mxu0
        %v660 = vadd.f32 0.0, %v659
        %v661 = vpop.f32.mrf.mxu0
        %v662 = vpop.f32.mrf.mxu0
        %v663 = vadd.f32 0.0, %v662
        %v664 = vpop.f32.mrf.mxu0
        %665 = vdwg.mxu0
        %v666 = vld [vmem:[%s525] sm:$0xf]
        %v667 = vld [vmem:[%s525 + $0x4] sm:$0xf]
        %v668 = vld [vmem:[%s525 + $0x8] sm:$0xf]
        %v669 = vld [vmem:[%s525 + $0xc] sm:$0xf]
        %v674 = vunpack.c.l.b16 %v666
        %v675 = vunpack.c.l.b16 %v667
        %v676 = vunpack.c.l.b16 %v668
        %v677 = vunpack.c.l.b16 %v669
        %v678 = vpack.c.b16 %v675, %v674
        %v679 = vpack.c.b16 %v677, %v676
        %682 = vmatprep.subr.bf16.mxu0 0
        %683 = vmatpush1.bf16.msra.mxu0 0
        %684 = vmatprep.subr.bf16.mxu0 0
        %685 = vmatpush1.bf16.msra.mxu0 0
        %686 = vmatprep.subr.bf16.mxu0 0
        %687 = vmatpush1.bf16.msra.mxu0 0
        %688 = vmatprep.subr.bf16.mxu0 0
        %689 = vmatpush1.bf16.msra.mxu0 0
        %690 = vmatprep.subr.bf16.mxu0 0
        %691 = vmatpush1.bf16.msra.mxu0 0
        %692 = vmatprep.subr.bf16.mxu0 0
        %693 = vmatpush1.bf16.msra.mxu0 0
        %694 = vmatprep.subr.bf16.mxu0 0
        %695 = vmatpush1.bf16.msra.mxu0 %v679
        %696 = vmatprep.subr.bf16.mxu0 0
        %697 = vmatpush1.bf16.msra.mxu0 %v678
        %698 = vmatprep.subr.bf16.mxu0 0
        %699 = vmatpush2.bf16.msra.mxu0 0
        %700 = vmatprep.subr.bf16.mxu0 0
        %701 = vmatpush2.bf16.msra.mxu0 0
        %702 = vmatprep.subr.bf16.mxu0 0
        %703 = vmatpush2.bf16.msra.mxu0 0
        %704 = vmatprep.subr.bf16.mxu0 0
        %705 = vmatpush2.bf16.msra.mxu0 0
        %706 = vmatprep.subr.bf16.mxu0 0
        %707 = vmatpush2.bf16.msra.mxu0 0
        %708 = vmatprep.subr.bf16.mxu0 0
        %709 = vmatpush2.bf16.msra.mxu0 0
        %710 = vmatprep.subr.bf16.mxu0 0
        %711 = vmatpush2.bf16.msra.mxu0 0
        %712 = vmatprep.subr.bf16.mxu0 0
        %713 = vmatpush2.bf16.msra.mxu0 0
        %714 = vmatprep.mubr.bf16.mxu0 0
        %715 = vmatmul.mubr.bf16.gmra.mxu0 %v566
        %v716 = vpop.f32.mrf.mxu0
        %v717 = vadd.f32 0.0, %v716
        %v718 = vpop.f32.mrf.mxu0
        %v719 = vpop.f32.mrf.mxu0
        %v720 = vadd.f32 0.0, %v719
        %v721 = vpop.f32.mrf.mxu0
        %722 = vdwg.mxu0
        %v723 = vmul.f32 %v603, 0.25
        %v724 = vmul.f32 %v606, 0.25
        %v725 = vpack.c.bf16 %v724, %v723
        %v726 = vpack.c.bf16 %v663, %v660
        %v727 = vpack.c.bf16 %v720, %v717
        %v728 = vld [vmem:[#allocation5] sm:$0x1]
        %v729 = vld [vmem:[#allocation5 + $0x1] sm:$0x1]
        %v730 = vld [vmem:[%s440] sm:$0xf]
        %v731 = vld [vmem:[%s440 + $0x4] sm:$0xf]
        %v732 = vld [vmem:[%s440 + $0x8] sm:$0xf]
        %v733 = vld [vmem:[%s440 + $0xc] sm:$0xf]
        %vm734 = vcmp.gt.f32.partialorder %v728, 0.5
        %v735 = vsel %vm734, -1e+09, 0.0
        %v737 = vlaneseq
        %v738 = vshrl.u32 %v737, 7
        %v739 = vsub.s32 0, %v738
        %v740 = vrot.slane %v735, %v739
        %vm742 = vcmask 130048
        %v744 = vsel %vm742, %v725, 0
        %v747 = vsel %vm742, %v726, 0
        %749 = vmatprep.subr.bf16.mxu0 0
        %750 = vmatpush1.bf16.xpose.msra.mxu0 0
        %751 = vmatprep.subr.bf16.mxu0 0
        %752 = vmatpush1.bf16.xpose.msra.mxu0 0
        %753 = vmatprep.subr.bf16.mxu0 0
        %754 = vmatpush1.bf16.xpose.msra.mxu0 0
        %755 = vmatprep.subr.bf16.mxu0 0
        %756 = vmatpush1.bf16.xpose.msra.mxu0 0
        %757 = vmatprep.subr.bf16.mxu0 0
        %758 = vmatpush1.bf16.xpose.msra.mxu0 0
        %759 = vmatprep.subr.bf16.mxu0 0
        %760 = vmatpush1.bf16.xpose.msra.mxu0 0
        %761 = vmatprep.subr.bf16.mxu0 0
        %762 = vmatpush1.bf16.xpose.msra.mxu0 0
        %763 = vmatprep.subr.bf16.mxu0 0
        %764 = vmatpush1.bf16.xpose.msra.mxu0 %v747
        %765 = vmatprep.subr.bf16.mxu0 0
        %766 = vmatpush2.bf16.xpose.msra.mxu0 0
        %767 = vmatprep.subr.bf16.mxu0 0
        %768 = vmatpush2.bf16.xpose.msra.mxu0 0
        %769 = vmatprep.subr.bf16.mxu0 0
        %770 = vmatpush2.bf16.xpose.msra.mxu0 0
        %771 = vmatprep.subr.bf16.mxu0 0
        %772 = vmatpush2.bf16.xpose.msra.mxu0 0
        %773 = vmatprep.subr.bf16.mxu0 0
        %774 = vmatpush2.bf16.xpose.msra.mxu0 0
        %775 = vmatprep.subr.bf16.mxu0 0
        %776 = vmatpush2.bf16.xpose.msra.mxu0 0
        %777 = vmatprep.subr.bf16.mxu0 0
        %778 = vmatpush2.bf16.xpose.msra.mxu0 0
        %779 = vmatprep.subr.bf16.mxu0 0
        %780 = vmatpush2.bf16.xpose.msra.mxu0 0
        %781 = vmatprep.mubr.bf16.mxu0 0
        %782 = vmatmul.mubr.bf16.gmra.mxu0 %v744
        %v783 = vpop.f32.mrf.mxu0
        %v784 = vadd.f32 %v740, %v783
        %v785 = vpop.f32.mrf.mxu0
        %v786 = vpop.f32.mrf.mxu0
        %v787 = vpop.f32.mrf.mxu0
        %788 = vdwg.mxu0
        %vm789 = vcmask 64512
        %v790 = vsel %vm789, %v784, -inf
        %791 = vmax.xlane.f32.xlu0 %v790
        %v792 = vpop.xlane.xlu0 %791
        %v793 = vsub.f32 %v784, %v792
        %v794 = vmul.f32 %v793, 1.442695
        %v795 = vpow.pop %v794
        %v796 = vsel %vm789, %v795, 0.0
        %797 = vadd.xlane.f32.xlu0 %v796
        %v798 = vpop.xlane.xlu0 %797
        %v799 = vrcp.pop %v798
        %v800 = vmul.f32 1.0, %v799
        %v801 = vmul.f32 %v795, %v800
        %v802 = vpack.c.bf16 %v801, %v801
        %vm803 = vcmask 60416
        %804 = vst.msk [vmem:[%s508] sm:$0xf] %vm803, %v802
        %v806 = vsel %vm789, %v802, 0
        %vm808 = vcmask 1043456
        %v810 = vsel %vm808, %v727, 0
        %812 = vmatprep.subr.bf16.mxu0 0
        %813 = vmatpush1.bf16.msra.mxu0 0
        %814 = vmatprep.subr.bf16.mxu0 0
        %815 = vmatpush1.bf16.msra.mxu0 0
        %816 = vmatprep.subr.bf16.mxu0 0
        %817 = vmatpush1.bf16.msra.mxu0 0
        %818 = vmatprep.subr.bf16.mxu0 0
        %819 = vmatpush1.bf16.msra.mxu0 0
        %820 = vmatprep.subr.bf16.mxu0 0
        %821 = vmatpush1.bf16.msra.mxu0 0
        %822 = vmatprep.subr.bf16.mxu0 0
        %823 = vmatpush1.bf16.msra.mxu0 0
        %824 = vmatprep.subr.bf16.mxu0 0
        %825 = vmatpush1.bf16.msra.mxu0 0
        %826 = vmatprep.subr.bf16.mxu0 0
        %827 = vmatpush1.bf16.msra.mxu0 %v810
        %828 = vmatprep.subr.bf16.mxu0 0
        %829 = vmatpush2.bf16.msra.mxu0 0
        %830 = vmatprep.subr.bf16.mxu0 0
        %831 = vmatpush2.bf16.msra.mxu0 0
        %832 = vmatprep.subr.bf16.mxu0 0
        %833 = vmatpush2.bf16.msra.mxu0 0
        %834 = vmatprep.subr.bf16.mxu0 0
        %835 = vmatpush2.bf16.msra.mxu0 0
        %836 = vmatprep.subr.bf16.mxu0 0
        %837 = vmatpush2.bf16.msra.mxu0 0
        %838 = vmatprep.subr.bf16.mxu0 0
        %839 = vmatpush2.bf16.msra.mxu0 0
        %840 = vmatprep.subr.bf16.mxu0 0
        %841 = vmatpush2.bf16.msra.mxu0 0
        %842 = vmatprep.subr.bf16.mxu0 0
        %843 = vmatpush2.bf16.msra.mxu0 0
        %844 = vmatprep.mubr.bf16.mxu0 0
        %845 = vmatmul.mubr.bf16.gmra.mxu0 %v806
        %v846 = vpop.f32.mrf.mxu0
        %v847 = vadd.f32 0.0, %v846
        %v848 = vpop.f32.mrf.mxu0
        %v849 = vpop.f32.mrf.mxu0
        %v850 = vpop.f32.mrf.mxu0
        %851 = vdwg.mxu0
        %v852 = vpack.c.bf16 %v847, %v847
        %854 = vrot.lane.b32.xlu0 %v725, 112
        %v855 = vpop.permute.xlu0 %854
        %857 = vrot.lane.b32.xlu0 %v726, 112
        %v858 = vpop.permute.xlu0 %857
        %v860 = vsel %vm742, %v855, 0
        %v863 = vsel %vm742, %v858, 0
        %865 = vmatprep.subr.bf16.mxu0 0
        %866 = vmatpush1.bf16.xpose.msra.mxu0 0
        %867 = vmatprep.subr.bf16.mxu0 0
        %868 = vmatpush1.bf16.xpose.msra.mxu0 0
        %869 = vmatprep.subr.bf16.mxu0 0
        %870 = vmatpush1.bf16.xpose.msra.mxu0 0
        %871 = vmatprep.subr.bf16.mxu0 0
        %872 = vmatpush1.bf16.xpose.msra.mxu0 0
        %873 = vmatprep.subr.bf16.mxu0 0
        %874 = vmatpush1.bf16.xpose.msra.mxu0 0
        %875 = vmatprep.subr.bf16.mxu0 0
        %876 = vmatpush1.bf16.xpose.msra.mxu0 0
        %877 = vmatprep.subr.bf16.mxu0 0
        %878 = vmatpush1.bf16.xpose.msra.mxu0 0
        %879 = vmatprep.subr.bf16.mxu0 0
        %880 = vmatpush1.bf16.xpose.msra.mxu0 %v863
        %881 = vmatprep.subr.bf16.mxu0 0
        %882 = vmatpush2.bf16.xpose.msra.mxu0 0
        %883 = vmatprep.subr.bf16.mxu0 0
        %884 = vmatpush2.bf16.xpose.msra.mxu0 0
        %885 = vmatprep.subr.bf16.mxu0 0
        %886 = vmatpush2.bf16.xpose.msra.mxu0 0
        %887 = vmatprep.subr.bf16.mxu0 0
        %888 = vmatpush2.bf16.xpose.msra.mxu0 0
        %889 = vmatprep.subr.bf16.mxu0 0
        %890 = vmatpush2.bf16.xpose.msra.mxu0 0
        %891 = vmatprep.subr.bf16.mxu0 0
        %892 = vmatpush2.bf16.xpose.msra.mxu0 0
        %893 = vmatprep.subr.bf16.mxu0 0
        %894 = vmatpush2.bf16.xpose.msra.mxu0 0
        %895 = vmatprep.subr.bf16.mxu0 0
        %896 = vmatpush2.bf16.xpose.msra.mxu0 0
        %897 = vmatprep.mubr.bf16.mxu0 0
        %898 = vmatmul.mubr.bf16.gmra.mxu0 %v860
        %v899 = vpop.f32.mrf.mxu0
        %v900 = vadd.f32 %v740, %v899
        %v901 = vpop.f32.mrf.mxu0
        %v902 = vpop.f32.mrf.mxu0
        %v903 = vpop.f32.mrf.mxu0
        %904 = vdwg.mxu0
        %v905 = vsel %vm789, %v900, -inf
        %906 = vmax.xlane.f32.xlu0 %v905
        %v907 = vpop.xlane.xlu0 %906
        %v908 = vsub.f32 %v900, %v907
        %v909 = vmul.f32 %v908, 1.442695
        %v910 = vpow.pop %v909
        %v911 = vsel %vm789, %v910, 0.0
        %912 = vadd.xlane.f32.xlu0 %v911
        %v913 = vpop.xlane.xlu0 %912
        %v914 = vrcp.pop %v913
        %v915 = vmul.f32 1.0, %v914
        %v916 = vmul.f32 %v910, %v915
        %v917 = vpack.c.bf16 %v916, %v916
        %s918 = scalar_lea.vmem %s508, 4 [#allocation10]
        %919 = vst.msk [vmem:[%s918] sm:$0xf] %vm803, %v917
        %921 = vrot.lane.b32.xlu0 %v727, 112
        %v922 = vpop.permute.xlu0 %921
        %v924 = vsel %vm789, %v917, 0
        %v927 = vsel %vm808, %v922, 0
        %929 = vmatprep.subr.bf16.mxu0 0
        %930 = vmatpush1.bf16.msra.mxu0 0
        %931 = vmatprep.subr.bf16.mxu0 0
        %932 = vmatpush1.bf16.msra.mxu0 0
        %933 = vmatprep.subr.bf16.mxu0 0
        %934 = vmatpush1.bf16.msra.mxu0 0
        %935 = vmatprep.subr.bf16.mxu0 0
        %936 = vmatpush1.bf16.msra.mxu0 0
        %937 = vmatprep.subr.bf16.mxu0 0
        %938 = vmatpush1.bf16.msra.mxu0 0
        %939 = vmatprep.subr.bf16.mxu0 0
        %940 = vmatpush1.bf16.msra.mxu0 0
        %941 = vmatprep.subr.bf16.mxu0 0
        %942 = vmatpush1.bf16.msra.mxu0 0
        %943 = vmatprep.subr.bf16.mxu0 0
        %944 = vmatpush1.bf16.msra.mxu0 %v927
        %945 = vmatprep.subr.bf16.mxu0 0
        %946 = vmatpush2.bf16.msra.mxu0 0
        %947 = vmatprep.subr.bf16.mxu0 0
        %948 = vmatpush2.bf16.msra.mxu0 0
        %949 = vmatprep.subr.bf16.mxu0 0
        %950 = vmatpush2.bf16.msra.mxu0 0
        %951 = vmatprep.subr.bf16.mxu0 0
        %952 = vmatpush2.bf16.msra.mxu0 0
        %953 = vmatprep.subr.bf16.mxu0 0
        %954 = vmatpush2.bf16.msra.mxu0 0
        %955 = vmatprep.subr.bf16.mxu0 0
        %956 = vmatpush2.bf16.msra.mxu0 0
        %957 = vmatprep.subr.bf16.mxu0 0
        %958 = vmatpush2.bf16.msra.mxu0 0
        %959 = vmatprep.subr.bf16.mxu0 0
        %960 = vmatpush2.bf16.msra.mxu0 0
        %961 = vmatprep.mubr.bf16.mxu0 0
        %962 = vmatmul.mubr.bf16.gmra.mxu0 %v924
        %v963 = vpop.f32.mrf.mxu0
        %v964 = vadd.f32 0.0, %v963
        %v965 = vpop.f32.mrf.mxu0
        %v966 = vpop.f32.mrf.mxu0
        %v967 = vpop.f32.mrf.mxu0
        %968 = vdwg.mxu0
        %v969 = vpack.c.bf16 %v964, %v964
        %v972 = vunpack.c.l.b16 %v732
        %v973 = vunpack.c.l.b16 %v733
        %v974 = vpack.c.b16 %v973, %v972
        %v977 = vsel %vm742, %v969, 0
        %979 = vmatprep.subr.bf16.mxu0 0
        %980 = vmatpush1.bf16.msra.mxu0 0
        %981 = vmatprep.subr.bf16.mxu0 0
        %982 = vmatpush1.bf16.msra.mxu0 0
        %983 = vmatprep.subr.bf16.mxu0 0
        %984 = vmatpush1.bf16.msra.mxu0 0
        %985 = vmatprep.subr.bf16.mxu0 0
        %986 = vmatpush1.bf16.msra.mxu0 0
        %987 = vmatprep.subr.bf16.mxu0 0
        %988 = vmatpush1.bf16.msra.mxu0 0
        %989 = vmatprep.subr.bf16.mxu0 0
        %990 = vmatpush1.bf16.msra.mxu0 0
        %991 = vmatprep.subr.bf16.mxu0 0
        %992 = vmatpush1.bf16.msra.mxu0 0
        %993 = vmatprep.subr.bf16.mxu0 0
        %994 = vmatpush1.bf16.msra.mxu0 %v974
        %995 = vmatprep.subr.bf16.mxu0 0
        %996 = vmatpush2.bf16.msra.mxu0 0
        %997 = vmatprep.subr.bf16.mxu0 0
        %998 = vmatpush2.bf16.msra.mxu0 0
        %999 = vmatprep.subr.bf16.mxu0 0
        %1000 = vmatpush2.bf16.msra.mxu0 0
        %1001 = vmatprep.subr.bf16.mxu0 0
        %1002 = vmatpush2.bf16.msra.mxu0 0
        %1003 = vmatprep.subr.bf16.mxu0 0
        %1004 = vmatpush2.bf16.msra.mxu0 0
        %1005 = vmatprep.subr.bf16.mxu0 0
        %1006 = vmatpush2.bf16.msra.mxu0 0
        %1007 = vmatprep.subr.bf16.mxu0 0
        %1008 = vmatpush2.bf16.msra.mxu0 0
        %1009 = vmatprep.subr.bf16.mxu0 0
        %1010 = vmatpush2.bf16.msra.mxu0 0
        %1011 = vmatprep.mubr.bf16.mxu0 0
        %1012 = vmatmul.mubr.bf16.gmra.mxu0 %v977
        %v1013 = vpop.f32.mrf.mxu0
        %v1014 = vadd.f32 0.0, %v1013
        %v1015 = vpop.f32.mrf.mxu0
        %v1016 = vpop.f32.mrf.mxu0
        %v1017 = vpop.f32.mrf.mxu0
        %1018 = vdwg.mxu0
        %v1021 = vunpack.c.l.b16 %v730
        %v1022 = vunpack.c.l.b16 %v731
        %v1023 = vpack.c.b16 %v1022, %v1021
        %v1026 = vsel %vm742, %v852, 0
        %1028 = vmatprep.subr.bf16.mxu0 0
        %1029 = vmatpush1.bf16.msra.mxu0 0
        %1030 = vmatprep.subr.bf16.mxu0 0
        %1031 = vmatpush1.bf16.msra.mxu0 0
        %1032 = vmatprep.subr.bf16.mxu0 0
        %1033 = vmatpush1.bf16.msra.mxu0 0
        %1034 = vmatprep.subr.bf16.mxu0 0
        %1035 = vmatpush1.bf16.msra.mxu0 0
        %1036 = vmatprep.subr.bf16.mxu0 0
        %1037 = vmatpush1.bf16.msra.mxu0 0
        %1038 = vmatprep.subr.bf16.mxu0 0
        %1039 = vmatpush1.bf16.msra.mxu0 0
        %1040 = vmatprep.subr.bf16.mxu0 0
        %1041 = vmatpush1.bf16.msra.mxu0 0
        %1042 = vmatprep.subr.bf16.mxu0 0
        %1043 = vmatpush1.bf16.msra.mxu0 %v1023
        %1044 = vmatprep.subr.bf16.mxu0 0
        %1045 = vmatpush2.bf16.msra.mxu0 0
        %1046 = vmatprep.subr.bf16.mxu0 0
        %1047 = vmatpush2.bf16.msra.mxu0 0
        %1048 = vmatprep.subr.bf16.mxu0 0
        %1049 = vmatpush2.bf16.msra.mxu0 0
        %1050 = vmatprep.subr.bf16.mxu0 0
        %1051 = vmatpush2.bf16.msra.mxu0 0
        %1052 = vmatprep.subr.bf16.mxu0 0
        %1053 = vmatpush2.bf16.msra.mxu0 0
        %1054 = vmatprep.subr.bf16.mxu0 0
        %1055 = vmatpush2.bf16.msra.mxu0 0
        %1056 = vmatprep.subr.bf16.mxu0 0
        %1057 = vmatpush2.bf16.msra.mxu0 0
        %1058 = vmatprep.subr.bf16.mxu0 0
        %1059 = vmatpush2.bf16.msra.mxu0 0
        %1060 = vmatprep.mubr.bf16.mxu0 0
        %1061 = vmatmul.mubr.bf16.gmra.mxu0 %v1026
        %v1062 = vpop.f32.mrf.mxu0
        %v1063 = vadd.f32 %v1014, %v1062
        %v1064 = vpop.f32.mrf.mxu0
        %v1065 = vpop.f32.mrf.mxu0
        %v1066 = vpop.f32.mrf.mxu0
        %1067 = vdwg.mxu0
        %vm1068 = vcmp.gt.f32.partialorder %v729, 0.5
        %v1069 = vsel %vm1068, -1e+09, 0.0
        %v1071 = vlaneseq
        %v1072 = vshrl.u32 %v1071, 7
        %v1073 = vsub.s32 0, %v1072
        %v1074 = vrot.slane %v1069, %v1073
        %v1076 = vrot.slane %v725, 4
        %v1077 = vrot.slane %v726, 4
        %v1079 = vsel %vm742, %v1076, 0
        %v1082 = vsel %vm742, %v1077, 0
        %1084 = vmatprep.subr.bf16.mxu0 0
        %1085 = vmatpush1.bf16.xpose.msra.mxu0 0
        %1086 = vmatprep.subr.bf16.mxu0 0
        %1087 = vmatpush1.bf16.xpose.msra.mxu0 0
        %1088 = vmatprep.subr.bf16.mxu0 0
        %1089 = vmatpush1.bf16.xpose.msra.mxu0 0
        %1090 = vmatprep.subr.bf16.mxu0 0
        %1091 = vmatpush1.bf16.xpose.msra.mxu0 0
        %1092 = vmatprep.subr.bf16.mxu0 0
        %1093 = vmatpush1.bf16.xpose.msra.mxu0 0
        %1094 = vmatprep.subr.bf16.mxu0 0
        %1095 = vmatpush1.bf16.xpose.msra.mxu0 0
        %1096 = vmatprep.subr.bf16.mxu0 0
        %1097 = vmatpush1.bf16.xpose.msra.mxu0 0
        %1098 = vmatprep.subr.bf16.mxu0 0
        %1099 = vmatpush1.bf16.xpose.msra.mxu0 %v1082
        %1100 = vmatprep.subr.bf16.mxu0 0
        %1101 = vmatpush2.bf16.xpose.msra.mxu0 0
        %1102 = vmatprep.subr.bf16.mxu0 0
        %1103 = vmatpush2.bf16.xpose.msra.mxu0 0
        %1104 = vmatprep.subr.bf16.mxu0 0
        %1105 = vmatpush2.bf16.xpose.msra.mxu0 0
        %1106 = vmatprep.subr.bf16.mxu0 0
        %1107 = vmatpush2.bf16.xpose.msra.mxu0 0
        %1108 = vmatprep.subr.bf16.mxu0 0
        %1109 = vmatpush2.bf16.xpose.msra.mxu0 0
        %1110 = vmatprep.subr.bf16.mxu0 0
        %1111 = vmatpush2.bf16.xpose.msra.mxu0 0
        %1112 = vmatprep.subr.bf16.mxu0 0
        %1113 = vmatpush2.bf16.xpose.msra.mxu0 0
        %1114 = vmatprep.subr.bf16.mxu0 0
        %1115 = vmatpush2.bf16.xpose.msra.mxu0 0
        %1116 = vmatprep.mubr.bf16.mxu0 0
        %1117 = vmatmul.mubr.bf16.gmra.mxu0 %v1079
        %v1118 = vpop.f32.mrf.mxu0
        %v1119 = vadd.f32 %v1074, %v1118
        %v1120 = vpop.f32.mrf.mxu0
        %v1121 = vpop.f32.mrf.mxu0
        %v1122 = vpop.f32.mrf.mxu0
        %1123 = vdwg.mxu0
        %v1124 = vsel %vm789, %v1119, -inf
        %1125 = vmax.xlane.f32.xlu0 %v1124
        %v1126 = vpop.xlane.xlu0 %1125
        %v1127 = vsub.f32 %v1119, %v1126
        %v1128 = vmul.f32 %v1127, 1.442695
        %v1129 = vpow.pop %v1128
        %v1130 = vsel %vm789, %v1129, 0.0
        %1131 = vadd.xlane.f32.xlu0 %v1130
        %v1132 = vpop.xlane.xlu0 %1131
        %v1133 = vrcp.pop %v1132
        %v1134 = vmul.f32 1.0, %v1133
        %v1135 = vmul.f32 %v1129, %v1134
        %v1136 = vpack.c.bf16 %v1135, %v1135
        %s1137 = scalar_lea.vmem %s508, 8 [#allocation10]
        %1138 = vst.msk [vmem:[%s1137] sm:$0xf] %vm803, %v1136
        %v1139 = vrot.slane %v727, 4
        %v1141 = vsel %vm789, %v1136, 0
        %v1144 = vsel %vm808, %v1139, 0
        %1146 = vmatprep.subr.bf16.mxu0 0
        %1147 = vmatpush1.bf16.msra.mxu0 0
        %1148 = vmatprep.subr.bf16.mxu0 0
        %1149 = vmatpush1.bf16.msra.mxu0 0
        %1150 = vmatprep.subr.bf16.mxu0 0
        %1151 = vmatpush1.bf16.msra.mxu0 0
        %1152 = vmatprep.subr.bf16.mxu0 0
        %1153 = vmatpush1.bf16.msra.mxu0 0
        %1154 = vmatprep.subr.bf16.mxu0 0
        %1155 = vmatpush1.bf16.msra.mxu0 0
        %1156 = vmatprep.subr.bf16.mxu0 0
        %1157 = vmatpush1.bf16.msra.mxu0 0
        %1158 = vmatprep.subr.bf16.mxu0 0
        %1159 = vmatpush1.bf16.msra.mxu0 0
        %1160 = vmatprep.subr.bf16.mxu0 0
        %1161 = vmatpush1.bf16.msra.mxu0 %v1144
        %1162 = vmatprep.subr.bf16.mxu0 0
        %1163 = vmatpush2.bf16.msra.mxu0 0
        %1164 = vmatprep.subr.bf16.mxu0 0
        %1165 = vmatpush2.bf16.msra.mxu0 0
        %1166 = vmatprep.subr.bf16.mxu0 0
        %1167 = vmatpush2.bf16.msra.mxu0 0
        %1168 = vmatprep.subr.bf16.mxu0 0
        %1169 = vmatpush2.bf16.msra.mxu0 0
        %1170 = vmatprep.subr.bf16.mxu0 0
        %1171 = vmatpush2.bf16.msra.mxu0 0
        %1172 = vmatprep.subr.bf16.mxu0 0
        %1173 = vmatpush2.bf16.msra.mxu0 0
        %1174 = vmatprep.subr.bf16.mxu0 0
        %1175 = vmatpush2.bf16.msra.mxu0 0
        %1176 = vmatprep.subr.bf16.mxu0 0
        %1177 = vmatpush2.bf16.msra.mxu0 0
        %1178 = vmatprep.mubr.bf16.mxu0 0
        %1179 = vmatmul.mubr.bf16.gmra.mxu0 %v1141
        %v1180 = vpop.f32.mrf.mxu0
        %v1181 = vadd.f32 0.0, %v1180
        %v1182 = vpop.f32.mrf.mxu0
        %v1183 = vpop.f32.mrf.mxu0
        %v1184 = vpop.f32.mrf.mxu0
        %1185 = vdwg.mxu0
        %v1186 = vpack.c.bf16 %v1181, %v1181
        %1187 = vrot.lane.b32.xlu0 %v1076, 112
        %v1188 = vpop.permute.xlu0 %1187
        %1189 = vrot.lane.b32.xlu0 %v1077, 112
        %v1190 = vpop.permute.xlu0 %1189
        %v1192 = vsel %vm742, %v1188, 0
        %v1195 = vsel %vm742, %v1190, 0
        %1197 = vmatprep.subr.bf16.mxu0 0
        %1198 = vmatpush1.bf16.xpose.msra.mxu0 0
        %1199 = vmatprep.subr.bf16.mxu0 0
        %1200 = vmatpush1.bf16.xpose.msra.mxu0 0
        %1201 = vmatprep.subr.bf16.mxu0 0
        %1202 = vmatpush1.bf16.xpose.msra.mxu0 0
        %1203 = vmatprep.subr.bf16.mxu0 0
        %1204 = vmatpush1.bf16.xpose.msra.mxu0 0
        %1205 = vmatprep.subr.bf16.mxu0 0
        %1206 = vmatpush1.bf16.xpose.msra.mxu0 0
        %1207 = vmatprep.subr.bf16.mxu0 0
        %1208 = vmatpush1.bf16.xpose.msra.mxu0 0
        %1209 = vmatprep.subr.bf16.mxu0 0
        %1210 = vmatpush1.bf16.xpose.msra.mxu0 0
        %1211 = vmatprep.subr.bf16.mxu0 0
        %1212 = vmatpush1.bf16.xpose.msra.mxu0 %v1195
        %1213 = vmatprep.subr.bf16.mxu0 0
        %1214 = vmatpush2.bf16.xpose.msra.mxu0 0
        %1215 = vmatprep.subr.bf16.mxu0 0
        %1216 = vmatpush2.bf16.xpose.msra.mxu0 0
        %1217 = vmatprep.subr.bf16.mxu0 0
        %1218 = vmatpush2.bf16.xpose.msra.mxu0 0
        %1219 = vmatprep.subr.bf16.mxu0 0
        %1220 = vmatpush2.bf16.xpose.msra.mxu0 0
        %1221 = vmatprep.subr.bf16.mxu0 0
        %1222 = vmatpush2.bf16.xpose.msra.mxu0 0
        %1223 = vmatprep.subr.bf16.mxu0 0
        %1224 = vmatpush2.bf16.xpose.msra.mxu0 0
        %1225 = vmatprep.subr.bf16.mxu0 0
        %1226 = vmatpush2.bf16.xpose.msra.mxu0 0
        %1227 = vmatprep.subr.bf16.mxu0 0
        %1228 = vmatpush2.bf16.xpose.msra.mxu0 0
        %1229 = vmatprep.mubr.bf16.mxu0 0
        %1230 = vmatmul.mubr.bf16.gmra.mxu0 %v1192
        %v1231 = vpop.f32.mrf.mxu0
        %v1232 = vadd.f32 %v1074, %v1231
        %v1233 = vpop.f32.mrf.mxu0
        %v1234 = vpop.f32.mrf.mxu0
        %v1235 = vpop.f32.mrf.mxu0
        %1236 = vdwg.mxu0
        %v1237 = vsel %vm789, %v1232, -inf
        %1238 = vmax.xlane.f32.xlu0 %v1237
        %v1239 = vpop.xlane.xlu0 %1238
        %v1240 = vsub.f32 %v1232, %v1239
        %v1241 = vmul.f32 %v1240, 1.442695
        %v1242 = vpow.pop %v1241
        %v1243 = vsel %vm789, %v1242, 0.0
        %1244 = vadd.xlane.f32.xlu0 %v1243
        %v1245 = vpop.xlane.xlu0 %1244
        %v1246 = vrcp.pop %v1245
        %v1247 = vmul.f32 1.0, %v1246
        %v1248 = vmul.f32 %v1242, %v1247
        %v1249 = vpack.c.bf16 %v1248, %v1248
        %s1250 = scalar_lea.vmem %s508, 12 [#allocation10]
        %1251 = vst.msk [vmem:[%s1250] sm:$0xf] %vm803, %v1249
        %1252 = vrot.lane.b32.xlu0 %v1139, 112
        %v1253 = vpop.permute.xlu0 %1252
        %v1255 = vsel %vm789, %v1249, 0
        %v1258 = vsel %vm808, %v1253, 0
        %1260 = vmatprep.subr.bf16.mxu0 0
        %1261 = vmatpush1.bf16.msra.mxu0 0
        %1262 = vmatprep.subr.bf16.mxu0 0
        %1263 = vmatpush1.bf16.msra.mxu0 0
        %1264 = vmatprep.subr.bf16.mxu0 0
        %1265 = vmatpush1.bf16.msra.mxu0 0
        %1266 = vmatprep.subr.bf16.mxu0 0
        %1267 = vmatpush1.bf16.msra.mxu0 0
        %1268 = vmatprep.subr.bf16.mxu0 0
        %1269 = vmatpush1.bf16.msra.mxu0 0
        %1270 = vmatprep.subr.bf16.mxu0 0
        %1271 = vmatpush1.bf16.msra.mxu0 0
        %1272 = vmatprep.subr.bf16.mxu0 0
        %1273 = vmatpush1.bf16.msra.mxu0 0
        %1274 = vmatprep.subr.bf16.mxu0 0
        %1275 = vmatpush1.bf16.msra.mxu0 %v1258
        %1276 = vmatprep.subr.bf16.mxu0 0
        %1277 = vmatpush2.bf16.msra.mxu0 0
        %1278 = vmatprep.subr.bf16.mxu0 0
        %1279 = vmatpush2.bf16.msra.mxu0 0
        %1280 = vmatprep.subr.bf16.mxu0 0
        %1281 = vmatpush2.bf16.msra.mxu0 0
        %1282 = vmatprep.subr.bf16.mxu0 0
        %1283 = vmatpush2.bf16.msra.mxu0 0
        %1284 = vmatprep.subr.bf16.mxu0 0
        %1285 = vmatpush2.bf16.msra.mxu0 0
        %1286 = vmatprep.subr.bf16.mxu0 0
        %1287 = vmatpush2.bf16.msra.mxu0 0
        %1288 = vmatprep.subr.bf16.mxu0 0
        %1289 = vmatpush2.bf16.msra.mxu0 0
        %1290 = vmatprep.subr.bf16.mxu0 0
        %1291 = vmatpush2.bf16.msra.mxu0 0
        %1292 = vmatprep.mubr.bf16.mxu0 0
        %1293 = vmatmul.mubr.bf16.gmra.mxu0 %v1255
        %v1294 = vpop.f32.mrf.mxu0
        %v1295 = vadd.f32 0.0, %v1294
        %v1296 = vpop.f32.mrf.mxu0
        %v1297 = vpop.f32.mrf.mxu0
        %v1298 = vpop.f32.mrf.mxu0
        %1299 = vdwg.mxu0
        %v1300 = vpack.c.bf16 %v1295, %v1295
        %v1302 = vsel %vm742, %v1300, 0
        %1304 = vmatprep.subr.bf16.mxu0 0
        %1305 = vmatpush1.bf16.msra.mxu0 0
        %1306 = vmatprep.subr.bf16.mxu0 0
        %1307 = vmatpush1.bf16.msra.mxu0 0
        %1308 = vmatprep.subr.bf16.mxu0 0
        %1309 = vmatpush1.bf16.msra.mxu0 0
        %1310 = vmatprep.subr.bf16.mxu0 0
        %1311 = vmatpush1.bf16.msra.mxu0 0
        %1312 = vmatprep.subr.bf16.mxu0 0
        %1313 = vmatpush1.bf16.msra.mxu0 0
        %1314 = vmatprep.subr.bf16.mxu0 0
        %1315 = vmatpush1.bf16.msra.mxu0 0
        %1316 = vmatprep.subr.bf16.mxu0 0
        %1317 = vmatpush1.bf16.msra.mxu0 0
        %1318 = vmatprep.subr.bf16.mxu0 0
        %1319 = vmatpush1.bf16.msra.mxu0 %v974
        %1320 = vmatprep.subr.bf16.mxu0 0
        %1321 = vmatpush2.bf16.msra.mxu0 0
        %1322 = vmatprep.subr.bf16.mxu0 0
        %1323 = vmatpush2.bf16.msra.mxu0 0
        %1324 = vmatprep.subr.bf16.mxu0 0
        %1325 = vmatpush2.bf16.msra.mxu0 0
        %1326 = vmatprep.subr.bf16.mxu0 0
        %1327 = vmatpush2.bf16.msra.mxu0 0
        %1328 = vmatprep.subr.bf16.mxu0 0
        %1329 = vmatpush2.bf16.msra.mxu0 0
        %1330 = vmatprep.subr.bf16.mxu0 0
        %1331 = vmatpush2.bf16.msra.mxu0 0
        %1332 = vmatprep.subr.bf16.mxu0 0
        %1333 = vmatpush2.bf16.msra.mxu0 0
        %1334 = vmatprep.subr.bf16.mxu0 0
        %1335 = vmatpush2.bf16.msra.mxu0 0
        %1336 = vmatprep.mubr.bf16.mxu0 0
        %1337 = vmatmul.mubr.bf16.gmra.mxu0 %v1302
        %v1338 = vpop.f32.mrf.mxu0
        %v1339 = vadd.f32 0.0, %v1338
        %v1340 = vpop.f32.mrf.mxu0
        %v1341 = vpop.f32.mrf.mxu0
        %v1342 = vpop.f32.mrf.mxu0
        %1343 = vdwg.mxu0
        %v1345 = vsel %vm742, %v1186, 0
        %1347 = vmatprep.subr.bf16.mxu0 0
        %1348 = vmatpush1.bf16.msra.mxu0 0
        %1349 = vmatprep.subr.bf16.mxu0 0
        %1350 = vmatpush1.bf16.msra.mxu0 0
        %1351 = vmatprep.subr.bf16.mxu0 0
        %1352 = vmatpush1.bf16.msra.mxu0 0
        %1353 = vmatprep.subr.bf16.mxu0 0
        %1354 = vmatpush1.bf16.msra.mxu0 0
        %1355 = vmatprep.subr.bf16.mxu0 0
        %1356 = vmatpush1.bf16.msra.mxu0 0
        %1357 = vmatprep.subr.bf16.mxu0 0
        %1358 = vmatpush1.bf16.msra.mxu0 0
        %1359 = vmatprep.subr.bf16.mxu0 0
        %1360 = vmatpush1.bf16.msra.mxu0 0
        %1361 = vmatprep.subr.bf16.mxu0 0
        %1362 = vmatpush1.bf16.msra.mxu0 %v1023
        %1363 = vmatprep.subr.bf16.mxu0 0
        %1364 = vmatpush2.bf16.msra.mxu0 0
        %1365 = vmatprep.subr.bf16.mxu0 0
        %1366 = vmatpush2.bf16.msra.mxu0 0
        %1367 = vmatprep.subr.bf16.mxu0 0
        %1368 = vmatpush2.bf16.msra.mxu0 0
        %1369 = vmatprep.subr.bf16.mxu0 0
        %1370 = vmatpush2.bf16.msra.mxu0 0
        %1371 = vmatprep.subr.bf16.mxu0 0
        %1372 = vmatpush2.bf16.msra.mxu0 0
        %1373 = vmatprep.subr.bf16.mxu0 0
        %1374 = vmatpush2.bf16.msra.mxu0 0
        %1375 = vmatprep.subr.bf16.mxu0 0
        %1376 = vmatpush2.bf16.msra.mxu0 0
        %1377 = vmatprep.subr.bf16.mxu0 0
        %1378 = vmatpush2.bf16.msra.mxu0 0
        %1379 = vmatprep.mubr.bf16.mxu0 0
        %1380 = vmatmul.mubr.bf16.gmra.mxu0 %v1345
        %v1381 = vpop.f32.mrf.mxu0
        %v1382 = vadd.f32 %v1339, %v1381
        %v1383 = vpop.f32.mrf.mxu0
        %v1384 = vpop.f32.mrf.mxu0
        %v1385 = vpop.f32.mrf.mxu0
        %1386 = vdwg.mxu0
        %v1387 = vadd.f32 %v1063, %v545
        %v1388 = vadd.f32 %v1382, %v546
        %v1389 = vsel %vm564, %v1387, 0.0
        %1390 = vadd.xlane.f32.xlu0 %v1389
        %v1391 = vpop.xlane.xlu0 %1390
        %v1392 = vsel %vm564, %v1388, 0.0
        %1393 = vadd.xlane.f32.xlu0 %v1392
        %v1394 = vpop.xlane.xlu0 %1393
        %v1395 = vmul.f32 %v1391, 0.03125
        %v1396 = vmul.f32 %v1394, 0.03125
        %v1397 = vsub.f32 %v1387, %v1395
        %v1398 = vsub.f32 %v1388, %v1396
        %v1399 = vmul.f32 %v1397, %v1397
        %v1400 = vmul.f32 %v1398, %v1398
        %v1401 = vsel %vm564, %v1399, 0.0
        %1402 = vadd.xlane.f32.xlu0 %v1401
        %v1403 = vpop.xlane.xlu0 %1402
        %v1404 = vsel %vm564, %v1400, 0.0
        %1405 = vadd.xlane.f32.xlu0 %v1404
        %v1406 = vpop.xlane.xlu0 %1405
        %v1407 = vmul.f32 %v1403, 0.03125
        %v1408 = vmul.f32 %v1406, 0.03125
        %v1409 = vadd.f32 %v1407, 1e-05
        %v1410 = vadd.f32 %v1408, 1e-05
        %v1411 = vrsqrt.pop %v1409
        %v1412 = vrsqrt.pop %v1410
        %v1413 = vmul.f32 %v1397, %v1411
        %v1414 = vmul.f32 %v1398, %v1412
        %v1415 = vpack.c.bf16 %v1414, %v1413
        %v1416 = vld [vmem:[%s449] sm:$0xf]
        %v1417 = vld [vmem:[%s449 + $0x4] sm:$0xf]
        %v1418 = vld [vmem:[%s449 + $0x8] sm:$0xf]
        %v1419 = vld [vmem:[%s449 + $0xc] sm:$0xf]
        %v1424 = vunpack.c.l.b16 %v1416
        %v1425 = vunpack.c.l.b16 %v1417
        %v1426 = vunpack.c.l.b16 %v1418
        %v1427 = vunpack.c.l.b16 %v1419
        %v1428 = vpack.c.b16 %v1425, %v1424
        %v1429 = vpack.c.b16 %v1427, %v1426
        %v1433 = vsel %vm564, %v1415, 0
        %1435 = vmatprep.subr.bf16.mxu0 0
        %1436 = vmatpush1.bf16.msra.mxu0 0
        %1437 = vmatprep.subr.bf16.mxu0 0
        %1438 = vmatpush1.bf16.msra.mxu0 0
        %1439 = vmatprep.subr.bf16.mxu0 0
        %1440 = vmatpush1.bf16.msra.mxu0 0
        %1441 = vmatprep.subr.bf16.mxu0 0
        %1442 = vmatpush1.bf16.msra.mxu0 0
        %1443 = vmatprep.subr.bf16.mxu0 0
        %1444 = vmatpush1.bf16.msra.mxu0 0
        %1445 = vmatprep.subr.bf16.mxu0 0
        %1446 = vmatpush1.bf16.msra.mxu0 0
        %1447 = vmatprep.subr.bf16.mxu0 0
        %1448 = vmatpush1.bf16.msra.mxu0 %v1429
        %1449 = vmatprep.subr.bf16.mxu0 0
        %1450 = vmatpush1.bf16.msra.mxu0 %v1428
        %1451 = vmatprep.subr.bf16.mxu0 0
        %1452 = vmatpush2.bf16.msra.mxu0 0
        %1453 = vmatprep.subr.bf16.mxu0 0
        %1454 = vmatpush2.bf16.msra.mxu0 0
        %1455 = vmatprep.subr.bf16.mxu0 0
        %1456 = vmatpush2.bf16.msra.mxu0 0
        %1457 = vmatprep.subr.bf16.mxu0 0
        %1458 = vmatpush2.bf16.msra.mxu0 0
        %1459 = vmatprep.subr.bf16.mxu0 0
        %1460 = vmatpush2.bf16.msra.mxu0 0
        %1461 = vmatprep.subr.bf16.mxu0 0
        %1462 = vmatpush2.bf16.msra.mxu0 0
        %1463 = vmatprep.subr.bf16.mxu0 0
        %1464 = vmatpush2.bf16.msra.mxu0 0
        %1465 = vmatprep.subr.bf16.mxu0 0
        %1466 = vmatpush2.bf16.msra.mxu0 0
        %1467 = vmatprep.mubr.bf16.mxu0 0
        %1468 = vmatmul.mubr.bf16.gmra.mxu0 %v1433
        %v1469 = vpop.f32.mrf.mxu0
        %v1470 = vadd.f32 0.0, %v1469
        %v1471 = vpop.f32.mrf.mxu0
        %v1472 = vpop.f32.mrf.mxu0
        %v1473 = vadd.f32 0.0, %v1472
        %v1474 = vpop.f32.mrf.mxu0
        %1475 = vdwg.mxu0
        %v1476 = vmax.f32 %v1470, 0.0
        %v1477 = vmax.f32 %v1473, 0.0
        %v1478 = vpack.c.bf16 %v1477, %v1476
        %v1479 = vld [vmem:[%s530] sm:$0xf]
        %v1480 = vld [vmem:[%s530 + $0x4] sm:$0xf]
        %v1481 = vld [vmem:[%s530 + $0x8] sm:$0xf]
        %v1482 = vld [vmem:[%s530 + $0xc] sm:$0xf]
        %v1483 = vld [vmem:[%s530 + $0x10] sm:$0xf]
        %v1484 = vld [vmem:[%s530 + $0x14] sm:$0xf]
        %v1485 = vld [vmem:[%s530 + $0x18] sm:$0xf]
        %v1486 = vld [vmem:[%s530 + $0x1c] sm:$0xf]
        %v1495 = vunpack.c.l.b16 %v1479
        %v1496 = vunpack.c.l.b16 %v1480
        %v1497 = vunpack.c.l.b16 %v1481
        %v1498 = vunpack.c.l.b16 %v1482
        %v1499 = vunpack.c.l.b16 %v1483
        %v1500 = vunpack.c.l.b16 %v1484
        %v1501 = vunpack.c.l.b16 %v1485
        %v1502 = vunpack.c.l.b16 %v1486
        %v1503 = vpack.c.b16 %v1496, %v1495
        %v1504 = vpack.c.b16 %v1498, %v1497
        %v1505 = vpack.c.b16 %v1500, %v1499
        %v1506 = vpack.c.b16 %v1502, %v1501
        %vm1511 = vcmask 523264
        %v1513 = vsel %vm1511, %v1478, 0
        %1515 = vmatprep.subr.bf16.mxu0 0
        %1516 = vmatpush1.bf16.msra.mxu0 0
        %1517 = vmatprep.subr.bf16.mxu0 0
        %1518 = vmatpush1.bf16.msra.mxu0 0
        %1519 = vmatprep.subr.bf16.mxu0 0
        %1520 = vmatpush1.bf16.msra.mxu0 0
        %1521 = vmatprep.subr.bf16.mxu0 0
        %1522 = vmatpush1.bf16.msra.mxu0 0
        %1523 = vmatprep.subr.bf16.mxu0 0
        %1524 = vmatpush1.bf16.msra.mxu0 %v1506
        %1525 = vmatprep.subr.bf16.mxu0 0
        %1526 = vmatpush1.bf16.msra.mxu0 %v1505
        %1527 = vmatprep.subr.bf16.mxu0 0
        %1528 = vmatpush1.bf16.msra.mxu0 %v1504
        %1529 = vmatprep.subr.bf16.mxu0 0
        %1530 = vmatpush1.bf16.msra.mxu0 %v1503
        %1531 = vmatprep.subr.bf16.mxu0 0
        %1532 = vmatpush2.bf16.msra.mxu0 0
        %1533 = vmatprep.subr.bf16.mxu0 0
        %1534 = vmatpush2.bf16.msra.mxu0 0
        %1535 = vmatprep.subr.bf16.mxu0 0
        %1536 = vmatpush2.bf16.msra.mxu0 0
        %1537 = vmatprep.subr.bf16.mxu0 0
        %1538 = vmatpush2.bf16.msra.mxu0 0
        %1539 = vmatprep.subr.bf16.mxu0 0
        %1540 = vmatpush2.bf16.msra.mxu0 0
        %1541 = vmatprep.subr.bf16.mxu0 0
        %1542 = vmatpush2.bf16.msra.mxu0 0
        %1543 = vmatprep.subr.bf16.mxu0 0
        %1544 = vmatpush2.bf16.msra.mxu0 0
        %1545 = vmatprep.subr.bf16.mxu0 0
        %1546 = vmatpush2.bf16.msra.mxu0 0
        %1547 = vmatprep.mubr.bf16.mxu0 0
        %1548 = vmatmul.mubr.bf16.gmra.mxu0 %v1513
        %v1549 = vpop.f32.mrf.mxu0
        %v1550 = vadd.f32 %v1413, %v1549
        %v1551 = vpop.f32.mrf.mxu0
        %v1552 = vpop.f32.mrf.mxu0
        %v1553 = vadd.f32 %v1414, %v1552
        %v1554 = vpop.f32.mrf.mxu0
        %1555 = vdwg.mxu0
        %v1556 = vsel %vm564, %v1550, 0.0
        %1557 = vadd.xlane.f32.xlu0 %v1556
        %v1558 = vpop.xlane.xlu0 %1557
        %v1559 = vsel %vm564, %v1553, 0.0
        %1560 = vadd.xlane.f32.xlu0 %v1559
        %v1561 = vpop.xlane.xlu0 %1560
        %v1562 = vmul.f32 %v1558, 0.03125
        %v1563 = vmul.f32 %v1561, 0.03125
        %v1564 = vsub.f32 %v1550, %v1562
        %v1565 = vsub.f32 %v1553, %v1563
        %v1566 = vmul.f32 %v1564, %v1564
        %v1567 = vmul.f32 %v1565, %v1565
        %v1568 = vsel %vm564, %v1566, 0.0
        %1569 = vadd.xlane.f32.xlu0 %v1568
        %v1570 = vpop.xlane.xlu0 %1569
        %v1571 = vsel %vm564, %v1567, 0.0
        %1572 = vadd.xlane.f32.xlu0 %v1571
        %v1573 = vpop.xlane.xlu0 %1572
        %v1574 = vmul.f32 %v1570, 0.03125
        %v1575 = vmul.f32 %v1573, 0.03125
        %v1576 = vadd.f32 %v1574, 1e-05
        %v1577 = vadd.f32 %v1575, 1e-05
        %v1578 = vrsqrt.pop %v1576
        %v1579 = vrsqrt.pop %v1577
        %v1580 = vmul.f32 %v1564, %v1578
        %v1581 = vmul.f32 %v1565, %v1579
        %1582 = vst.msk [vmem:[#allocation9] sm:$0xff] %vm564, %v1580
        %1583 = vst.msk [vmem:[#allocation9 + $0x8] sm:$0xff] %vm564, %v1581
        %s1584 = sand.u32 %s283, 1
        %s1585 = scalar_lea.sflag [#allocation11], %s1584
        %s1586 = sand.u32 %s283, 1
        %s1587 = smul.addr %s1586, 16
        %s1588 = scalar_lea.vmem [#allocation10], %s1587
        // Predicated region
        $region73: #{tpu_custom_call.1} parent=51 // pred_check
          %p1589 = pneg %p265
        $region74: #{tpu_custom_call.1} parent=51 // pred_check_branch
          %1591 = sbr.rel (%p1589) target = $region76
        $region75: #{tpu_custom_call.1} parent=51 // pred_region
          %s1592 = smul.u32 2, %s31
          %s1594 = ssub.s32 256, 256
          %1595 = vsyncadd [#allocation4], %s1594
          %s1596 = smul.addr %s1592, 128
          %s1597 = scalar_lea.hbm %s8, %s1596
          %s1598 = sshll.u32 [#allocation9], 4
          %s1599 = int_to_ptr.vmem [resolvable:$true] %s1598
          %1604 = dma.vmem_to_hbm [thread:$0]  %s1599, 256, %s1597, [#allocation4], 128, 128, 8
        $region76: #{tpu_custom_call.1} parent=51 // pred_fallthru
          _
        // Predicated region
        $region77: #{tpu_custom_call.1} parent=51 // pred_check
          %p1605 = pneg %p293
        $region78: #{tpu_custom_call.1} parent=51 // pred_check_branch
          %1607 = sbr.rel (%p1605) target = $region80
        $region79: #{tpu_custom_call.1} parent=51 // pred_region
          #allocation13 [shape = 'u32[6]{0}', space=smem, size = 0x18, scoped, tag = 'DMA stride descriptor']
          %s1608 = smul.u32 2, %s31
          %s1610 = ssub.s32 256, 256
          %1611 = vsyncadd %s1585, %s1610
          %s1612 = smul.addr %s32, 2
          %s1613 = smul.addr %s1608, 4
          %s1614 = sadd.s32 %s1612, %s1613
          %s1615 = smul.addr %s1614, 64
          %s1616 = scalar_lea.hbm %s9, %s1615
          %s1618 = sshll.u32 1, 14
          %s1619 = sxor.u32 4294967295, %s1618
          %s1622 = sshll.u32 7, 18
          %s1623 = sxor.u32 4294967295, %s1622
          %s1624 = sand.u32 0, %s1623
          %s1626 = sor.u32 %s1624, 0
          %s1627 = sshll.u32 %s1588, 4
          %s1628 = int_to_ptr.vmem [resolvable:$true] %s1627
          %1634 = sst [smem:[#allocation13]] 128
          %s1635 = scalar_lea.smem [#allocation13], 1
          %1636 = sst [smem:[%s1635]] 256
          %s1637 = scalar_lea.smem [#allocation13], 2
          %1638 = sst [smem:[%s1637]] 2
          %s1639 = scalar_lea.smem [#allocation13], 3
          %1640 = sst [smem:[%s1639]] 64
          %s1641 = scalar_lea.smem [#allocation13], 4
          %1642 = sst [smem:[%s1641]] 64
          %s1643 = scalar_lea.smem [#allocation13], 5
          %1644 = sst [smem:[%s1643]] 4
          %1646 = dma.general %s1628, 256, %s1616, %s1585, 131072, [#allocation13], %s1626, 0
        $region80: #{tpu_custom_call.1} parent=51 // pred_fallthru
          _
        // Predicated region
        $region81: #{tpu_custom_call.1} parent=51 // pred_check
          %p1647 = pneg %p265
        $region82: #{tpu_custom_call.1} parent=51 // pred_check_branch
          %1649 = sbr.rel (%p1647) target = $region84
        $region83: #{tpu_custom_call.1} parent=51 // pred_region
          %1650 = dma.done [#allocation4], 256
        $region84: #{tpu_custom_call.1} parent=51 // pred_fallthru
          _
      $region52: #{tpu_custom_call.1} parent=5 // pred_fallthru
        _
      %p1651 = scmp.le.s32.totalorder 2, %s22
      // Predicated region
      $region85: #{tpu_custom_call.1} parent=5 // pred_check
        %p1652 = pneg %p1651
      $region86: #{tpu_custom_call.1} parent=5 // pred_check_branch
        %1654 = sbr.rel (%p1652) target = $region88
      $region87: #{tpu_custom_call.1} parent=5 // pred_region
        %s1655 = ssub.s32 %s22, 2
        // Predicated region
        $region89: #{tpu_custom_call.1} parent=87 // pred_check
          %p1656 = pneg %p299
        $region90: #{tpu_custom_call.1} parent=87 // pred_check_branch
          %1658 = sbr.rel (%p1656) target = $region92
        $region91: #{tpu_custom_call.1} parent=87 // pred_region
          %s1659 = sand.u32 %s284, 1
          %s1660 = scalar_lea.sflag [#allocation11], %s1659
          %s1661 = sand.u32 %s284, 1
          %s1662 = smul.addr %s1661, 16
          %s1663 = scalar_lea.vmem [#allocation10], %s1662
          %1664 = dma.done %s1660, 256
        $region92: #{tpu_custom_call.1} parent=87 // pred_fallthru
          _
      $region88: #{tpu_custom_call.1} parent=5 // pred_fallthru
        _
    $region6: #{tpu_custom_call.1} parent=1 // loop_footer
      %s26 = sadd.s32 1, %s22
    $region7: #{tpu_custom_call.1} parent=1 // loop_footer_branch
      %21 = sbr.rel target = $region3
    $region8: #{tpu_custom_call.1} parent=1 // loop_exit
      _
    %1665 = vsyncpa [#allocation3], 1
    %s1666 = scalar_lea.sflag [#allocation3], 1
    %1667 = vsyncpa %s1666, 1
    %1668 = vsyncpa [#allocation6], 1
    %1669 = vsyncpa [#allocation4], 1
    %s1670 = scalar_lea.sflag [#allocation4], 1
    %1671 = vsyncpa %s1670, 1
    %1672 = vsyncpa [#allocation11], 1
    %s1673 = scalar_lea.sflag [#allocation11], 1
    %1674 = vsyncpa %s1673, 1

</llo_original>
